<compile_context>
chip_gen: v6e
topology: v6e:2x2x1
jax: 0.10.0
libtpu: 0.0.40
codegen_flags: <defaults>
</compile_context>

<pallas_src>
import math
import numpy as np
import jax
import jax.numpy as jnp
from jax.experimental import pallas as pl
from jax.experimental.pallas import tpu as pltpu

# ---- small, module-consistent config ---------------------------------------
INPUT_SIZE = 11          # input_size
FIN_PAD = 16             # input features padded to a sublane-friendly width
HIDDEN = 32              # hidden_size (d_model)
NUM_LAYERS = 2           # num_layers
NUM_HEADS = 4            # num_heads
HEAD_DIM = HIDDEN // NUM_HEADS
DIM_FF = 64              # dim_feedforward
SEQ = 8                  # sequence length of the input
BATCH = 2
MAX_LEN = 500            # max_sequence_length
LN_EPS = 1e-5

T_REAL = SEQ + 1         # cls token + sequence
TP = 16                  # T padded to a sublane multiple
R = BATCH * TP           # folded row count inside the kernel (32)
LANES = NUM_HEADS * R    # packed score width (128) — exactly one lane tile

# ---- bf16 weight-slab row layout (all blocks 16-row aligned for bf16 tiles) ---
IN_OFF, OUT_OFF, FF1_OFF, FF2_OFF = 0, HIDDEN, 2 * HIDDEN, 3 * HIDDEN
LAYER_W_ROWS = 3 * HIDDEN + DIM_FF                 # 160 rows per layer
EMB_ROW = NUM_LAYERS * LAYER_W_ROWS                # 320
FC1_ROW = EMB_ROW + FIN_PAD                        # 336
FC2_ROW = FC1_ROW + HIDDEN                         # 368
HMASK_ROW = FC2_ROW + HIDDEN // 2                  # 384
W_ROWS = HMASK_ROW + LANES                         # 512

# ---- f32 aux-slab row layout --------------------------------------------------
ATTN_ROW = 0                                       # [R, 128] additive attention bias
POS_ROW = R                                        # [R, :H]  cls + pe + emb_b fold
BIAS_BASE = 2 * R                                  # 8 rows of biases/LN per layer
FC1B_ROW = BIAS_BASE + NUM_LAYERS * 8              # 80
FC2B_ROW = FC1B_ROW + 1                            # 81
AUX_ROWS = ((FC2B_ROW + 1 + 7) // 8) * 8           # 88


def _layer_norm(x, w, b):
    mean = jnp.mean(x, axis=-1, keepdims=True)
    var = jnp.mean((x - mean) ** 2, axis=-1, keepdims=True)
    return (x - mean) * jax.lax.rsqrt(var + LN_EPS) * w + b


def sinusoidal_pe(max_len, d_model):
    position = np.arange(max_len, dtype=np.float32)[:, None]
    div_term = np.exp(np.arange(0, d_model, 2, dtype=np.float32)
                      * (-math.log(10000.0) / d_model))
    pe = np.zeros((max_len, d_model), np.float32)
    pe[:, 0::2] = np.sin(position * div_term)
    pe[:, 1::2] = np.cos(position * div_term)
    return pe


# ---- the Pallas kernel -------------------------------------------------------
def crypto_transformer_kernel(x_ref, w_ref, aux_ref, out_ref):
    f32, bf16 = jnp.float32, jnp.bfloat16

    # hoisted, read once (no per-layer re-materialization)
    attn_bias = aux_ref[ATTN_ROW:ATTN_ROW + R, :]                       # [32,128] f32
    hmask = w_ref[HMASK_ROW:HMASK_ROW + LANES, :HIDDEN]                 # [128,32] bf16
    posadd = aux_ref[POS_ROW:POS_ROW + R, :HIDDEN]                      # [32,32]  f32

    # embedding + cls + positional encoding (posadd carries cls, pe and emb bias)
    emb_wt = w_ref[EMB_ROW:EMB_ROW + FIN_PAD, :HIDDEN]                  # [16,32] bf16
    h = jnp.dot(x_ref[...].astype(bf16), emb_wt,
                preferred_element_type=f32) + posadd                    # [32,32] f32

    for l in range(NUM_LAYERS):
        wb = l * LAYER_W_ROWS
        bb = BIAS_BASE + l * 8
        in_wt = w_ref[wb + IN_OFF:wb + IN_OFF + HIDDEN, :3 * HIDDEN]    # [32,96] bf16
        out_wt = w_ref[wb + OUT_OFF:wb + OUT_OFF + HIDDEN, :HIDDEN]     # [32,32]
        ff1_wt = w_ref[wb + FF1_OFF:wb + FF1_OFF + HIDDEN, :DIM_FF]     # [32,64]
        ff2_wt = w_ref[wb + FF2_OFF:wb + FF2_OFF + DIM_FF, :HIDDEN]     # [64,32]

        # fused QKV projection; 1/sqrt(dH) scale is baked into the Q columns.
        qkv = (jnp.dot(h.astype(bf16), in_wt, preferred_element_type=f32)
               + aux_ref[bb + 0:bb + 1, :3 * HIDDEN])                   # [32,96] f32
        q = qkv[:, :HIDDEN].astype(bf16)
        k = qkv[:, HIDDEN:2 * HIDDEN].astype(bf16)
        v = qkv[:, 2 * HIDDEN:3 * HIDDEN].astype(bf16)

        # lane-pack all heads: replicate K/V 4x along sublanes, block-diag mask
        # keeps only each head's own columns.
        kexp = jnp.concatenate([k] * NUM_HEADS, axis=0) * hmask         # [128,32] bf16
        vexp = jnp.concatenate([v] * NUM_HEADS, axis=0) * hmask         # [128,32] bf16

        # scores for ALL heads in one matmul: s[r, h*R + c] = q_h[r] . k_h[c]
        s = jax.lax.dot_general(q, kexp, (((1,), (1,)), ((), ())),
                                preferred_element_type=f32)             # [32,128] f32
        s = s + attn_bias            # block-diag over batches + hides padded keys
        # global row max is enough for stability: it cancels inside each head block
        # and the -1e9-masked keys underflow to exactly 0 after exp.
        e = jnp.exp(s - jnp.max(s, axis=-1, keepdims=True))             # [32,128] f32
        e_bf = e.astype(bf16)

        # per-head softmax denominator and context, both as lane-dense matmuls;
        # ctx lands directly in the concatenated [R, H] layout.
        ctx = jnp.dot(e_bf, vexp, preferred_element_type=f32)           # [32,32]
        den = jnp.dot(e_bf, hmask, preferred_element_type=f32)          # [32,32]
        ctx = ctx * pl.reciprocal(den, approx=True)

        attn = (jnp.dot(ctx.astype(bf16), out_wt, preferred_element_type=f32)
                + aux_ref[bb + 1:bb + 2, :HIDDEN])
        h = _layer_norm(h + attn,
                        aux_ref[bb + 2:bb + 3, :HIDDEN],
                        aux_ref[bb + 3:bb + 4, :HIDDEN])

        ff = (jnp.dot(h.astype(bf16), ff1_wt, preferred_element_type=f32)
              + aux_ref[bb + 6:bb + 7, :DIM_FF])
        ff = jnp.maximum(ff, 0.0)
        ff = (jnp.dot(ff.astype(bf16), ff2_wt, preferred_element_type=f32)
              + aux_ref[bb + 7:bb + 8, :HIDDEN])
        h = _layer_norm(h + ff,
                        aux_ref[bb + 4:bb + 5, :HIDDEN],
                        aux_ref[bb + 5:bb + 6, :HIDDEN])

    # prediction head on the full slab (no cross-sublane gather on the epilogue);
    # the wrapper selects the cls rows (0 and TP) outside the kernel.
    fc1_wt = w_ref[FC1_ROW:FC1_ROW + HIDDEN, :HIDDEN // 2]              # [32,16]
    fc2_wt = w_ref[FC2_ROW:FC2_ROW + HIDDEN // 2, :1]                   # [16,1]
    z = jnp.maximum(
        jnp.dot(h.astype(bf16), fc1_wt, preferred_element_type=f32)
        + aux_ref[FC1B_ROW:FC1B_ROW + 1, :HIDDEN // 2], 0.0)            # [32,16]
    out_ref[...] = (jnp.dot(z.astype(bf16), fc2_wt, preferred_element_type=f32)
                    + aux_ref[FC2B_ROW:FC2B_ROW + 1, :1])               # [32,1]


# ---- parameters (deterministic, PyTorch-shaped) ------------------------------
def make_params(key):
    ks = jax.random.split(key, 14)

    def u(k, shape, fan_in):
        bound = 1.0 / math.sqrt(fan_in)
        return jax.random.uniform(k, shape, jnp.float32, -bound, bound)

    p = {}
    p['emb_w'] = u(ks[0], (HIDDEN, INPUT_SIZE), INPUT_SIZE)
    p['emb_b'] = u(ks[1], (HIDDEN,), INPUT_SIZE)
    p['cls'] = jnp.zeros((1, HIDDEN), jnp.float32)      # nn.Parameter(torch.zeros(1,1,H))
    p['in_w'] = u(ks[2], (NUM_LAYERS, 3 * HIDDEN, HIDDEN), HIDDEN)
    p['in_b'] = u(ks[3], (NUM_LAYERS, 3 * HIDDEN), HIDDEN)
    p['out_w'] = u(ks[4], (NUM_LAYERS, HIDDEN, HIDDEN), HIDDEN)
    p['out_b'] = u(ks[5], (NUM_LAYERS, HIDDEN), HIDDEN)
    p['ln1_w'] = jnp.ones((NUM_LAYERS, HIDDEN), jnp.float32)
    p['ln1_b'] = jnp.zeros((NUM_LAYERS, HIDDEN), jnp.float32)
    p['ln2_w'] = jnp.ones((NUM_LAYERS, HIDDEN), jnp.float32)
    p['ln2_b'] = jnp.zeros((NUM_LAYERS, HIDDEN), jnp.float32)
    p['ff1_w'] = u(ks[6], (NUM_LAYERS, DIM_FF, HIDDEN), HIDDEN)
    p['ff1_b'] = u(ks[7], (NUM_LAYERS, DIM_FF), HIDDEN)
    p['ff2_w'] = u(ks[8], (NUM_LAYERS, HIDDEN, DIM_FF), DIM_FF)
    p['ff2_b'] = u(ks[9], (NUM_LAYERS, HIDDEN), DIM_FF)
    p['fc1_w'] = u(ks[10], (HIDDEN // 2, HIDDEN), HIDDEN)
    p['fc1_b'] = u(ks[11], (HIDDEN // 2,), HIDDEN)
    p['fc2_w'] = u(ks[12], (1, HIDDEN // 2), HIDDEN // 2)
    p['fc2_b'] = u(ks[13], (1,), HIDDEN // 2)
    return p


# ---- one-time parameter prep: pack everything into 2 slabs -------------------
def prepare_params(p, seq_len):
    t_real = seq_len + 1
    scale = 1.0 / math.sqrt(HEAD_DIM)
    pe = sinusoidal_pe(MAX_LEN, HIDDEN)[:t_real]                        # [T, H]

    # ---------- bf16 weight slab [W_ROWS, 128] --------------------------------
    w = np.zeros((W_ROWS, 128), np.float32)
    for l in range(NUM_LAYERS):
        base = l * LAYER_W_ROWS
        iw = np.array(p['in_w'][l]).T                                   # [H, 3H]
        w[base + IN_OFF:base + IN_OFF + HIDDEN, :HIDDEN] = iw[:, :HIDDEN] * scale
        w[base + IN_OFF:base + IN_OFF + HIDDEN, HIDDEN:3 * HIDDEN] = iw[:, HIDDEN:]
        w[base + OUT_OFF:base + OUT_OFF + HIDDEN, :HIDDEN] = np.array(p['out_w'][l]).T
        w[base + FF1_OFF:base + FF1_OFF + HIDDEN, :DIM_FF] = np.array(p['ff1_w'][l]).T
        w[base + FF2_OFF:base + FF2_OFF + DIM_FF, :HIDDEN] = np.array(p['ff2_w'][l]).T
    w[EMB_ROW:EMB_ROW + INPUT_SIZE, :HIDDEN] = np.array(p['emb_w']).T   # pad rows = 0
    w[FC1_ROW:FC1_ROW + HIDDEN, :HIDDEN // 2] = np.array(p['fc1_w']).T
    w[FC2_ROW:FC2_ROW + HIDDEN // 2, :1] = np.array(p['fc2_w']).T
    # block-diagonal head mask (builds kexp/vexp and the softmax denominator)
    for hh in range(NUM_HEADS):
        w[HMASK_ROW + hh * R:HMASK_ROW + (hh + 1) * R,
          hh * HEAD_DIM:(hh + 1) * HEAD_DIM] = 1.0
    w_slab = jnp.asarray(w, jnp.bfloat16)

    # ---------- f32 aux slab [AUX_ROWS, 128] -----------------------------------
    aux = np.zeros((AUX_ROWS, 128), np.float32)
    # additive attention bias: block-diag over batches, real key positions only,
    # replicated per head block along lanes.
    m = np.full((R, R), -1e9, np.float32)
    for b in range(BATCH):
        m[b * TP:(b + 1) * TP, b * TP:b * TP + t_real] = 0.0
    aux[ATTN_ROW:ATTN_ROW + R, :] = np.tile(m, (1, NUM_HEADS))
    # cls token + positional encoding + embedding bias fold
    posadd = np.zeros((TP, HIDDEN), np.float32)
    posadd[0] = np.array(p['cls'])[0] + pe[0]
    posadd[1:t_real] = pe[1:] + np.array(p['emb_b'])[None, :]
    aux[POS_ROW:POS_ROW + R, :HIDDEN] = np.tile(posadd, (BATCH, 1))
    # per-layer biases + LayerNorm params (scale baked into the Q bias block)
    for l in range(NUM_LAYERS):
        rb = BIAS_BASE + l * 8
        ib = np.array(p['in_b'][l])
        aux[rb + 0, :HIDDEN] = ib[:HIDDEN] * scale
        aux[rb + 0, HIDDEN:3 * HIDDEN] = ib[HIDDEN:]
        aux[rb + 1, :HIDDEN] = np.array(p['out_b'][l])
        aux[rb + 2, :HIDDEN] = np.array(p['ln1_w'][l])
        aux[rb + 3, :HIDDEN] = np.array(p['ln1_b'][l])
        aux[rb + 4, :HIDDEN] = np.array(p['ln2_w'][l])
        aux[rb + 5, :HIDDEN] = np.array(p['ln2_b'][l])
        aux[rb + 6, :DIM_FF] = np.array(p['ff1_b'][l])
        aux[rb + 7, :HIDDEN] = np.array(p['ff2_b'][l])
    aux[FC1B_ROW, :HIDDEN // 2] = np.array(p['fc1_b'])
    aux[FC2B_ROW, :1] = np.array(p['fc2_b'])
    aux_slab = jnp.asarray(aux)

    return w_slab, aux_slab


def crypto_transformer_pallas(prepped, x):
    w_slab, aux_slab = prepped
    B, S, Fin = x.shape
    assert B == BATCH and S == SEQ and Fin == INPUT_SIZE
    # row 0 of each batch is reserved for the cls token, rows S+1..Tp-1 are padding
    # (both zero; cls/pe/emb-bias are injected via the precomputed posadd rows).
    x_pad = jnp.pad(x, ((0, 0), (1, TP - 1 - S), (0, FIN_PAD - Fin)))   # [B, Tp, 16]
    x_flat = x_pad.reshape(B * TP, FIN_PAD)                             # [B*Tp, 16]
    out = pl.pallas_call(
        crypto_transformer_kernel,
        out_shape=jax.ShapeDtypeStruct((R, 1), jnp.float32),
        in_specs=[pl.BlockSpec(memory_space=pltpu.MemorySpace.VMEM)] * 3,
        out_specs=pl.BlockSpec(memory_space=pltpu.MemorySpace.VMEM),
    )(x_flat, w_slab, aux_slab)
    # cls rows are rows 0 and TP of the folded slab -> squeeze(-1) -> [B]
    return out[:, 0].reshape(B, TP)[:, 0]


# ---- pure-JAX f32 reference (same math, for a sanity check) -------------------
def reference_forward(p, x):
    B, S, _ = x.shape
    h = jnp.einsum('bsf,hf->bsh', x, p['emb_w']) + p['emb_b']
    cls = jnp.broadcast_to(p['cls'][None], (B, 1, HIDDEN))
    h = jnp.concatenate([cls, h], axis=1)
    T = S + 1
    h = h + jnp.asarray(sinusoidal_pe(MAX_LEN, HIDDEN)[:T])[None]
    scale = 1.0 / math.sqrt(HEAD_DIM)
    for l in range(NUM_LAYERS):
        qkv = jnp.einsum('bth,kh->btk', h, p['in_w'][l]) + p['in_b'][l]
        q, k, v = jnp.split(qkv, 3, axis=-1)
        q = q.reshape(B, T, NUM_HEADS, HEAD_DIM).transpose(0, 2, 1, 3) * scale
        k = k.reshape(B, T, NUM_HEADS, HEAD_DIM).transpose(0, 2, 1, 3)
        v = v.reshape(B, T, NUM_HEADS, HEAD_DIM).transpose(0, 2, 1, 3)
        s = jnp.einsum('bhqd,bhkd->bhqk', q, k)
        ctx = jnp.einsum('bhqk,bhkd->bhqd', jax.nn.softmax(s, axis=-1), v)
        ctx = ctx.transpose(0, 2, 1, 3).reshape(B, T, HIDDEN)
        attn = jnp.einsum('bth,oh->bto', ctx, p['out_w'][l]) + p['out_b'][l]
        h = _layer_norm(h + attn, p['ln1_w'][l], p['ln1_b'][l])
        ff = jax.nn.relu(jnp.einsum('bth,fh->btf', h, p['ff1_w'][l]) + p['ff1_b'][l])
        ff = jnp.einsum('btf,hf->bth', ff, p['ff2_w'][l]) + p['ff2_b'][l]
        h = _layer_norm(h + ff, p['ln2_w'][l], p['ln2_b'][l])
    cls_out = h[:, 0, :]
    z = jax.nn.relu(cls_out @ p['fc1_w'].T + p['fc1_b'])
    pred = z @ p['fc2_w'].T + p['fc2_b']
    return pred[:, 0]


if __name__ == "__main__":
    key = jax.random.PRNGKey(0)
    kx, kp = jax.random.split(key)
    x = jax.random.normal(kx, (BATCH, SEQ, INPUT_SIZE), jnp.float32)
    params = make_params(kp)
    prepped = prepare_params(params, SEQ)   # one-time packing (hoisted out of the call)

    out = jax.block_until_ready(crypto_transformer_pallas(prepped, x))
    ref = jax.block_until_ready(reference_forward(params, x))
    assert out.shape == (BATCH,), out.shape
    # bf16 MXU operands + approx reciprocal => compare at a bf16-appropriate tolerance
    if not bool(jnp.allclose(out, ref, atol=2e-2, rtol=2e-2)):
        raise AssertionError(f"mismatch: pallas={out} ref={ref}")
    print("KERNEL_OK")
</pallas_src>

<mosaic_0001>
module attributes {stable_mosaic.version = 11 : i64} {
  func.func @crypto_transformer_kernel(%arg0: memref<32x16xf32, #tpu.memory_space<vmem>>, %arg1: memref<512x128xbf16, #tpu.memory_space<vmem>>, %arg2: memref<88x128xf32, #tpu.memory_space<vmem>>, %arg3: memref<32x1xf32, #tpu.memory_space<vmem>>) attributes {dimension_semantics = [], scalar_prefetch = 0 : i64, scratch_operands = 0 : i64, tpu.core_type = #tpu.core_type<tc>} {
    %c0 = arith.constant 0 : index
    %c0_0 = arith.constant 0 : index
    %0 = vector.load %arg2[%c0, %c0_0] : memref<88x128xf32, #tpu.memory_space<vmem>>, vector<32x128xf32>
    %c384 = arith.constant 384 : index
    %c0_1 = arith.constant 0 : index
    %1 = vector.load %arg1[%c384, %c0_1] : memref<512x128xbf16, #tpu.memory_space<vmem>>, vector<128x32xbf16>
    %c32 = arith.constant 32 : index
    %c0_2 = arith.constant 0 : index
    %2 = vector.load %arg2[%c32, %c0_2] : memref<88x128xf32, #tpu.memory_space<vmem>>, vector<32x32xf32>
    %c320 = arith.constant 320 : index
    %c0_3 = arith.constant 0 : index
    %3 = vector.load %arg1[%c320, %c0_3] : memref<512x128xbf16, #tpu.memory_space<vmem>>, vector<16x32xbf16>
    %c0_4 = arith.constant 0 : index
    %c0_5 = arith.constant 0 : index
    %4 = vector.load %arg0[%c0_4, %c0_5] : memref<32x16xf32, #tpu.memory_space<vmem>>, vector<32x16xf32>
    %5 = arith.truncf %4 : vector<32x16xf32> to vector<32x16xbf16>
    %cst = arith.constant dense<0.000000e+00> : vector<32x32xf32>
    %6 = tpu.matmul %5, %3, %cst {dimension_numbers = #tpu.dot_dimension_numbers<[1], [0], [0], [1], [0, 0, 1, 1], [], []>} : vector<32x16xbf16>, vector<16x32xbf16>, vector<32x32xf32> -> vector<32x32xf32>
    %7 = arith.addf %6, %2 : vector<32x32xf32>
    %c0_6 = arith.constant 0 : index
    %c0_7 = arith.constant 0 : index
    %8 = vector.load %arg1[%c0_6, %c0_7] : memref<512x128xbf16, #tpu.memory_space<vmem>>, vector<32x96xbf16>
    %c32_8 = arith.constant 32 : index
    %c0_9 = arith.constant 0 : index
    %9 = vector.load %arg1[%c32_8, %c0_9] : memref<512x128xbf16, #tpu.memory_space<vmem>>, vector<32x32xbf16>
    %c64 = arith.constant 64 : index
    %c0_10 = arith.constant 0 : index
    %10 = vector.load %arg1[%c64, %c0_10] : memref<512x128xbf16, #tpu.memory_space<vmem>>, vector<32x64xbf16>
    %c96 = arith.constant 96 : index
    %c0_11 = arith.constant 0 : index
    %11 = vector.load %arg1[%c96, %c0_11] : memref<512x128xbf16, #tpu.memory_space<vmem>>, vector<64x32xbf16>
    %12 = arith.truncf %7 : vector<32x32xf32> to vector<32x32xbf16>
    %cst_12 = arith.constant dense<0.000000e+00> : vector<32x96xf32>
    %13 = tpu.matmul %12, %8, %cst_12 {dimension_numbers = #tpu.dot_dimension_numbers<[1], [0], [0], [1], [0, 0, 1, 1], [], []>} : vector<32x32xbf16>, vector<32x96xbf16>, vector<32x96xf32> -> vector<32x96xf32>
    %c64_13 = arith.constant 64 : index
    %c0_14 = arith.constant 0 : index
    %14 = vector.load %arg2[%c64_13, %c0_14] : memref<88x128xf32, #tpu.memory_space<vmem>>, vector<1x96xf32>
    %15 = vector.broadcast %14 : vector<1x96xf32> to vector<32x96xf32>
    %16 = arith.addf %13, %15 : vector<32x96xf32>
    %17 = vector.extract_strided_slice %16 {offsets = [0, 0], sizes = [32, 32], strides = [1, 1]} : vector<32x96xf32> to vector<32x32xf32>
    %18 = arith.truncf %17 : vector<32x32xf32> to vector<32x32xbf16>
    %19 = vector.extract_strided_slice %16 {offsets = [0, 32], sizes = [32, 32], strides = [1, 1]} : vector<32x96xf32> to vector<32x32xf32>
    %20 = arith.truncf %19 : vector<32x32xf32> to vector<32x32xbf16>
    %21 = vector.extract_strided_slice %16 {offsets = [0, 64], sizes = [32, 32], strides = [1, 1]} : vector<32x96xf32> to vector<32x32xf32>
    %22 = arith.truncf %21 : vector<32x32xf32> to vector<32x32xbf16>
    %23 = tpu.concatenate %20, %20, %20, %20 in 0 : vector<32x32xbf16>, vector<32x32xbf16>, vector<32x32xbf16>, vector<32x32xbf16> -> vector<128x32xbf16>
    %24 = arith.mulf %23, %1 : vector<128x32xbf16>
    %25 = tpu.concatenate %22, %22, %22, %22 in 0 : vector<32x32xbf16>, vector<32x32xbf16>, vector<32x32xbf16>, vector<32x32xbf16> -> vector<128x32xbf16>
    %26 = arith.mulf %25, %1 : vector<128x32xbf16>
    %cst_15 = arith.constant dense<0.000000e+00> : vector<32x128xf32>
    %27 = tpu.matmul %18, %24, %cst_15 {dimension_numbers = #tpu.dot_dimension_numbers<[1], [1], [0], [0], [0, 0, 1, 0], [], []>} : vector<32x32xbf16>, vector<128x32xbf16>, vector<32x128xf32> -> vector<32x128xf32>
    %28 = arith.addf %27, %0 : vector<32x128xf32>
    %cst_16 = arith.constant dense<0xFF800000> : vector<32xf32>
    %29 = vector.multi_reduction <maximumf>, %28, %cst_16 [1] : vector<32x128xf32> to vector<32xf32>
    %30 = vector.shape_cast %29 : vector<32xf32> to vector<32x1xf32>
    %31 = vector.broadcast %30 : vector<32x1xf32> to vector<32x128xf32>
    %32 = arith.subf %28, %31 : vector<32x128xf32>
    %33 = math.exp %32 : vector<32x128xf32>
    %34 = arith.truncf %33 : vector<32x128xf32> to vector<32x128xbf16>
    %cst_17 = arith.constant dense<0.000000e+00> : vector<32x32xf32>
    %35 = tpu.matmul %34, %26, %cst_17 {dimension_numbers = #tpu.dot_dimension_numbers<[1], [0], [0], [1], [0, 0, 1, 1], [], []>} : vector<32x128xbf16>, vector<128x32xbf16>, vector<32x32xf32> -> vector<32x32xf32>
    %cst_18 = arith.constant dense<0.000000e+00> : vector<32x32xf32>
    %36 = tpu.matmul %34, %1, %cst_18 {dimension_numbers = #tpu.dot_dimension_numbers<[1], [0], [0], [1], [0, 0, 1, 1], [], []>} : vector<32x128xbf16>, vector<128x32xbf16>, vector<32x32xf32> -> vector<32x32xf32>
    %37 = tpu.reciprocal %36 {approx = true} : vector<32x32xf32> -> vector<32x32xf32>
    %38 = arith.mulf %35, %37 : vector<32x32xf32>
    %39 = arith.truncf %38 : vector<32x32xf32> to vector<32x32xbf16>
    %cst_19 = arith.constant dense<0.000000e+00> : vector<32x32xf32>
    %40 = tpu.matmul %39, %9, %cst_19 {dimension_numbers = #tpu.dot_dimension_numbers<[1], [0], [0], [1], [0, 0, 1, 1], [], []>} : vector<32x32xbf16>, vector<32x32xbf16>, vector<32x32xf32> -> vector<32x32xf32>
    %c65 = arith.constant 65 : index
    %c0_20 = arith.constant 0 : index
    %41 = vector.load %arg2[%c65, %c0_20] : memref<88x128xf32, #tpu.memory_space<vmem>>, vector<1x32xf32>
    %42 = vector.broadcast %41 : vector<1x32xf32> to vector<32x32xf32>
    %43 = arith.addf %40, %42 : vector<32x32xf32>
    %44 = arith.addf %7, %43 : vector<32x32xf32>
    %c66 = arith.constant 66 : index
    %c0_21 = arith.constant 0 : index
    %45 = vector.load %arg2[%c66, %c0_21] : memref<88x128xf32, #tpu.memory_space<vmem>>, vector<1x32xf32>
    %c67 = arith.constant 67 : index
    %c0_22 = arith.constant 0 : index
    %46 = vector.load %arg2[%c67, %c0_22] : memref<88x128xf32, #tpu.memory_space<vmem>>, vector<1x32xf32>
    %cst_23 = arith.constant dense<0.000000e+00> : vector<32xf32>
    %47 = vector.multi_reduction <add>, %44, %cst_23 [1] : vector<32x32xf32> to vector<32xf32>
    %48 = vector.shape_cast %47 : vector<32xf32> to vector<32x1xf32>
    %cst_24 = arith.constant 3.200000e+01 : f32
    %49 = vector.broadcast %cst_24 : f32 to vector<32x1xf32>
    %50 = arith.divf %48, %49 : vector<32x1xf32>
    %51 = vector.broadcast %50 : vector<32x1xf32> to vector<32x32xf32>
    %52 = arith.subf %44, %51 : vector<32x32xf32>
    %53 = arith.mulf %52, %52 : vector<32x32xf32>
    %cst_25 = arith.constant dense<0.000000e+00> : vector<32xf32>
    %54 = vector.multi_reduction <add>, %53, %cst_25 [1] : vector<32x32xf32> to vector<32xf32>
    %55 = vector.shape_cast %54 : vector<32xf32> to vector<32x1xf32>
    %cst_26 = arith.constant 3.200000e+01 : f32
    %56 = vector.broadcast %cst_26 : f32 to vector<32x1xf32>
    %57 = arith.divf %55, %56 : vector<32x1xf32>
    %58 = vector.broadcast %50 : vector<32x1xf32> to vector<32x32xf32>
    %59 = arith.subf %44, %58 : vector<32x32xf32>
    %cst_27 = arith.constant 9.99999974E-6 : f32
    %60 = vector.broadcast %cst_27 : f32 to vector<32x1xf32>
    %61 = arith.addf %57, %60 : vector<32x1xf32>
    %62 = math.rsqrt %61 : vector<32x1xf32>
    %63 = vector.broadcast %62 : vector<32x1xf32> to vector<32x32xf32>
    %64 = arith.mulf %59, %63 : vector<32x32xf32>
    %65 = vector.broadcast %45 : vector<1x32xf32> to vector<32x32xf32>
    %66 = arith.mulf %64, %65 : vector<32x32xf32>
    %67 = vector.broadcast %46 : vector<1x32xf32> to vector<32x32xf32>
    %68 = arith.addf %66, %67 : vector<32x32xf32>
    %69 = arith.truncf %68 : vector<32x32xf32> to vector<32x32xbf16>
    %cst_28 = arith.constant dense<0.000000e+00> : vector<32x64xf32>
    %70 = tpu.matmul %69, %10, %cst_28 {dimension_numbers = #tpu.dot_dimension_numbers<[1], [0], [0], [1], [0, 0, 1, 1], [], []>} : vector<32x32xbf16>, vector<32x64xbf16>, vector<32x64xf32> -> vector<32x64xf32>
    %c70 = arith.constant 70 : index
    %c0_29 = arith.constant 0 : index
    %71 = vector.load %arg2[%c70, %c0_29] : memref<88x128xf32, #tpu.memory_space<vmem>>, vector<1x64xf32>
    %72 = vector.broadcast %71 : vector<1x64xf32> to vector<32x64xf32>
    %73 = arith.addf %70, %72 : vector<32x64xf32>
    %cst_30 = arith.constant 0.000000e+00 : f32
    %74 = vector.broadcast %cst_30 : f32 to vector<32x64xf32>
    %75 = arith.maximumf %73, %74 : vector<32x64xf32>
    %76 = arith.truncf %75 : vector<32x64xf32> to vector<32x64xbf16>
    %cst_31 = arith.constant dense<0.000000e+00> : vector<32x32xf32>
    %77 = tpu.matmul %76, %11, %cst_31 {dimension_numbers = #tpu.dot_dimension_numbers<[1], [0], [0], [1], [0, 0, 1, 1], [], []>} : vector<32x64xbf16>, vector<64x32xbf16>, vector<32x32xf32> -> vector<32x32xf32>
    %c71 = arith.constant 71 : index
    %c0_32 = arith.constant 0 : index
    %78 = vector.load %arg2[%c71, %c0_32] : memref<88x128xf32, #tpu.memory_space<vmem>>, vector<1x32xf32>
    %79 = vector.broadcast %78 : vector<1x32xf32> to vector<32x32xf32>
    %80 = arith.addf %77, %79 : vector<32x32xf32>
    %81 = arith.addf %68, %80 : vector<32x32xf32>
    %c68 = arith.constant 68 : index
    %c0_33 = arith.constant 0 : index
    %82 = vector.load %arg2[%c68, %c0_33] : memref<88x128xf32, #tpu.memory_space<vmem>>, vector<1x32xf32>
    %c69 = arith.constant 69 : index
    %c0_34 = arith.constant 0 : index
    %83 = vector.load %arg2[%c69, %c0_34] : memref<88x128xf32, #tpu.memory_space<vmem>>, vector<1x32xf32>
    %cst_35 = arith.constant dense<0.000000e+00> : vector<32xf32>
    %84 = vector.multi_reduction <add>, %81, %cst_35 [1] : vector<32x32xf32> to vector<32xf32>
    %85 = vector.shape_cast %84 : vector<32xf32> to vector<32x1xf32>
    %cst_36 = arith.constant 3.200000e+01 : f32
    %86 = vector.broadcast %cst_36 : f32 to vector<32x1xf32>
    %87 = arith.divf %85, %86 : vector<32x1xf32>
    %88 = vector.broadcast %87 : vector<32x1xf32> to vector<32x32xf32>
    %89 = arith.subf %81, %88 : vector<32x32xf32>
    %90 = arith.mulf %89, %89 : vector<32x32xf32>
    %cst_37 = arith.constant dense<0.000000e+00> : vector<32xf32>
    %91 = vector.multi_reduction <add>, %90, %cst_37 [1] : vector<32x32xf32> to vector<32xf32>
    %92 = vector.shape_cast %91 : vector<32xf32> to vector<32x1xf32>
    %cst_38 = arith.constant 3.200000e+01 : f32
    %93 = vector.broadcast %cst_38 : f32 to vector<32x1xf32>
    %94 = arith.divf %92, %93 : vector<32x1xf32>
    %95 = vector.broadcast %87 : vector<32x1xf32> to vector<32x32xf32>
    %96 = arith.subf %81, %95 : vector<32x32xf32>
    %cst_39 = arith.constant 9.99999974E-6 : f32
    %97 = vector.broadcast %cst_39 : f32 to vector<32x1xf32>
    %98 = arith.addf %94, %97 : vector<32x1xf32>
    %99 = math.rsqrt %98 : vector<32x1xf32>
    %100 = vector.broadcast %99 : vector<32x1xf32> to vector<32x32xf32>
    %101 = arith.mulf %96, %100 : vector<32x32xf32>
    %102 = vector.broadcast %82 : vector<1x32xf32> to vector<32x32xf32>
    %103 = arith.mulf %101, %102 : vector<32x32xf32>
    %104 = vector.broadcast %83 : vector<1x32xf32> to vector<32x32xf32>
    %105 = arith.addf %103, %104 : vector<32x32xf32>
    %c160 = arith.constant 160 : index
    %c0_40 = arith.constant 0 : index
    %106 = vector.load %arg1[%c160, %c0_40] : memref<512x128xbf16, #tpu.memory_space<vmem>>, vector<32x96xbf16>
    %c192 = arith.constant 192 : index
    %c0_41 = arith.constant 0 : index
    %107 = vector.load %arg1[%c192, %c0_41] : memref<512x128xbf16, #tpu.memory_space<vmem>>, vector<32x32xbf16>
    %c224 = arith.constant 224 : index
    %c0_42 = arith.constant 0 : index
    %108 = vector.load %arg1[%c224, %c0_42] : memref<512x128xbf16, #tpu.memory_space<vmem>>, vector<32x64xbf16>
    %c256 = arith.constant 256 : index
    %c0_43 = arith.constant 0 : index
    %109 = vector.load %arg1[%c256, %c0_43] : memref<512x128xbf16, #tpu.memory_space<vmem>>, vector<64x32xbf16>
    %110 = arith.truncf %105 : vector<32x32xf32> to vector<32x32xbf16>
    %cst_44 = arith.constant dense<0.000000e+00> : vector<32x96xf32>
    %111 = tpu.matmul %110, %106, %cst_44 {dimension_numbers = #tpu.dot_dimension_numbers<[1], [0], [0], [1], [0, 0, 1, 1], [], []>} : vector<32x32xbf16>, vector<32x96xbf16>, vector<32x96xf32> -> vector<32x96xf32>
    %c72 = arith.constant 72 : index
    %c0_45 = arith.constant 0 : index
    %112 = vector.load %arg2[%c72, %c0_45] : memref<88x128xf32, #tpu.memory_space<vmem>>, vector<1x96xf32>
    %113 = vector.broadcast %112 : vector<1x96xf32> to vector<32x96xf32>
    %114 = arith.addf %111, %113 : vector<32x96xf32>
    %115 = vector.extract_strided_slice %114 {offsets = [0, 0], sizes = [32, 32], strides = [1, 1]} : vector<32x96xf32> to vector<32x32xf32>
    %116 = arith.truncf %115 : vector<32x32xf32> to vector<32x32xbf16>
    %117 = vector.extract_strided_slice %114 {offsets = [0, 32], sizes = [32, 32], strides = [1, 1]} : vector<32x96xf32> to vector<32x32xf32>
    %118 = arith.truncf %117 : vector<32x32xf32> to vector<32x32xbf16>
    %119 = vector.extract_strided_slice %114 {offsets = [0, 64], sizes = [32, 32], strides = [1, 1]} : vector<32x96xf32> to vector<32x32xf32>
    %120 = arith.truncf %119 : vector<32x32xf32> to vector<32x32xbf16>
    %121 = tpu.concatenate %118, %118, %118, %118 in 0 : vector<32x32xbf16>, vector<32x32xbf16>, vector<32x32xbf16>, vector<32x32xbf16> -> vector<128x32xbf16>
    %122 = arith.mulf %121, %1 : vector<128x32xbf16>
    %123 = tpu.concatenate %120, %120, %120, %120 in 0 : vector<32x32xbf16>, vector<32x32xbf16>, vector<32x32xbf16>, vector<32x32xbf16> -> vector<128x32xbf16>
    %124 = arith.mulf %123, %1 : vector<128x32xbf16>
    %cst_46 = arith.constant dense<0.000000e+00> : vector<32x128xf32>
    %125 = tpu.matmul %116, %122, %cst_46 {dimension_numbers = #tpu.dot_dimension_numbers<[1], [1], [0], [0], [0, 0, 1, 0], [], []>} : vector<32x32xbf16>, vector<128x32xbf16>, vector<32x128xf32> -> vector<32x128xf32>
    %126 = arith.addf %125, %0 : vector<32x128xf32>
    %cst_47 = arith.constant dense<0xFF800000> : vector<32xf32>
    %127 = vector.multi_reduction <maximumf>, %126, %cst_47 [1] : vector<32x128xf32> to vector<32xf32>
    %128 = vector.shape_cast %127 : vector<32xf32> to vector<32x1xf32>
    %129 = vector.broadcast %128 : vector<32x1xf32> to vector<32x128xf32>
    %130 = arith.subf %126, %129 : vector<32x128xf32>
    %131 = math.exp %130 : vector<32x128xf32>
    %132 = arith.truncf %131 : vector<32x128xf32> to vector<32x128xbf16>
    %cst_48 = arith.constant dense<0.000000e+00> : vector<32x32xf32>
    %133 = tpu.matmul %132, %124, %cst_48 {dimension_numbers = #tpu.dot_dimension_numbers<[1], [0], [0], [1], [0, 0, 1, 1], [], []>} : vector<32x128xbf16>, vector<128x32xbf16>, vector<32x32xf32> -> vector<32x32xf32>
    %cst_49 = arith.constant dense<0.000000e+00> : vector<32x32xf32>
    %134 = tpu.matmul %132, %1, %cst_49 {dimension_numbers = #tpu.dot_dimension_numbers<[1], [0], [0], [1], [0, 0, 1, 1], [], []>} : vector<32x128xbf16>, vector<128x32xbf16>, vector<32x32xf32> -> vector<32x32xf32>
    %135 = tpu.reciprocal %134 {approx = true} : vector<32x32xf32> -> vector<32x32xf32>
    %136 = arith.mulf %133, %135 : vector<32x32xf32>
    %137 = arith.truncf %136 : vector<32x32xf32> to vector<32x32xbf16>
    %cst_50 = arith.constant dense<0.000000e+00> : vector<32x32xf32>
    %138 = tpu.matmul %137, %107, %cst_50 {dimension_numbers = #tpu.dot_dimension_numbers<[1], [0], [0], [1], [0, 0, 1, 1], [], []>} : vector<32x32xbf16>, vector<32x32xbf16>, vector<32x32xf32> -> vector<32x32xf32>
    %c73 = arith.constant 73 : index
    %c0_51 = arith.constant 0 : index
    %139 = vector.load %arg2[%c73, %c0_51] : memref<88x128xf32, #tpu.memory_space<vmem>>, vector<1x32xf32>
    %140 = vector.broadcast %139 : vector<1x32xf32> to vector<32x32xf32>
    %141 = arith.addf %138, %140 : vector<32x32xf32>
    %142 = arith.addf %105, %141 : vector<32x32xf32>
    %c74 = arith.constant 74 : index
    %c0_52 = arith.constant 0 : index
    %143 = vector.load %arg2[%c74, %c0_52] : memref<88x128xf32, #tpu.memory_space<vmem>>, vector<1x32xf32>
    %c75 = arith.constant 75 : index
    %c0_53 = arith.constant 0 : index
    %144 = vector.load %arg2[%c75, %c0_53] : memref<88x128xf32, #tpu.memory_space<vmem>>, vector<1x32xf32>
    %cst_54 = arith.constant dense<0.000000e+00> : vector<32xf32>
    %145 = vector.multi_reduction <add>, %142, %cst_54 [1] : vector<32x32xf32> to vector<32xf32>
    %146 = vector.shape_cast %145 : vector<32xf32> to vector<32x1xf32>
    %cst_55 = arith.constant 3.200000e+01 : f32
    %147 = vector.broadcast %cst_55 : f32 to vector<32x1xf32>
    %148 = arith.divf %146, %147 : vector<32x1xf32>
    %149 = vector.broadcast %148 : vector<32x1xf32> to vector<32x32xf32>
    %150 = arith.subf %142, %149 : vector<32x32xf32>
    %151 = arith.mulf %150, %150 : vector<32x32xf32>
    %cst_56 = arith.constant dense<0.000000e+00> : vector<32xf32>
    %152 = vector.multi_reduction <add>, %151, %cst_56 [1] : vector<32x32xf32> to vector<32xf32>
    %153 = vector.shape_cast %152 : vector<32xf32> to vector<32x1xf32>
    %cst_57 = arith.constant 3.200000e+01 : f32
    %154 = vector.broadcast %cst_57 : f32 to vector<32x1xf32>
    %155 = arith.divf %153, %154 : vector<32x1xf32>
    %156 = vector.broadcast %148 : vector<32x1xf32> to vector<32x32xf32>
    %157 = arith.subf %142, %156 : vector<32x32xf32>
    %cst_58 = arith.constant 9.99999974E-6 : f32
    %158 = vector.broadcast %cst_58 : f32 to vector<32x1xf32>
    %159 = arith.addf %155, %158 : vector<32x1xf32>
    %160 = math.rsqrt %159 : vector<32x1xf32>
    %161 = vector.broadcast %160 : vector<32x1xf32> to vector<32x32xf32>
    %162 = arith.mulf %157, %161 : vector<32x32xf32>
    %163 = vector.broadcast %143 : vector<1x32xf32> to vector<32x32xf32>
    %164 = arith.mulf %162, %163 : vector<32x32xf32>
    %165 = vector.broadcast %144 : vector<1x32xf32> to vector<32x32xf32>
    %166 = arith.addf %164, %165 : vector<32x32xf32>
    %167 = arith.truncf %166 : vector<32x32xf32> to vector<32x32xbf16>
    %cst_59 = arith.constant dense<0.000000e+00> : vector<32x64xf32>
    %168 = tpu.matmul %167, %108, %cst_59 {dimension_numbers = #tpu.dot_dimension_numbers<[1], [0], [0], [1], [0, 0, 1, 1], [], []>} : vector<32x32xbf16>, vector<32x64xbf16>, vector<32x64xf32> -> vector<32x64xf32>
    %c78 = arith.constant 78 : index
    %c0_60 = arith.constant 0 : index
    %169 = vector.load %arg2[%c78, %c0_60] : memref<88x128xf32, #tpu.memory_space<vmem>>, vector<1x64xf32>
    %170 = vector.broadcast %169 : vector<1x64xf32> to vector<32x64xf32>
    %171 = arith.addf %168, %170 : vector<32x64xf32>
    %cst_61 = arith.constant 0.000000e+00 : f32
    %172 = vector.broadcast %cst_61 : f32 to vector<32x64xf32>
    %173 = arith.maximumf %171, %172 : vector<32x64xf32>
    %174 = arith.truncf %173 : vector<32x64xf32> to vector<32x64xbf16>
    %cst_62 = arith.constant dense<0.000000e+00> : vector<32x32xf32>
    %175 = tpu.matmul %174, %109, %cst_62 {dimension_numbers = #tpu.dot_dimension_numbers<[1], [0], [0], [1], [0, 0, 1, 1], [], []>} : vector<32x64xbf16>, vector<64x32xbf16>, vector<32x32xf32> -> vector<32x32xf32>
    %c79 = arith.constant 79 : index
    %c0_63 = arith.constant 0 : index
    %176 = vector.load %arg2[%c79, %c0_63] : memref<88x128xf32, #tpu.memory_space<vmem>>, vector<1x32xf32>
    %177 = vector.broadcast %176 : vector<1x32xf32> to vector<32x32xf32>
    %178 = arith.addf %175, %177 : vector<32x32xf32>
    %179 = arith.addf %166, %178 : vector<32x32xf32>
    %c76 = arith.constant 76 : index
    %c0_64 = arith.constant 0 : index
    %180 = vector.load %arg2[%c76, %c0_64] : memref<88x128xf32, #tpu.memory_space<vmem>>, vector<1x32xf32>
    %c77 = arith.constant 77 : index
    %c0_65 = arith.constant 0 : index
    %181 = vector.load %arg2[%c77, %c0_65] : memref<88x128xf32, #tpu.memory_space<vmem>>, vector<1x32xf32>
    %cst_66 = arith.constant dense<0.000000e+00> : vector<32xf32>
    %182 = vector.multi_reduction <add>, %179, %cst_66 [1] : vector<32x32xf32> to vector<32xf32>
    %183 = vector.shape_cast %182 : vector<32xf32> to vector<32x1xf32>
    %cst_67 = arith.constant 3.200000e+01 : f32
    %184 = vector.broadcast %cst_67 : f32 to vector<32x1xf32>
    %185 = arith.divf %183, %184 : vector<32x1xf32>
    %186 = vector.broadcast %185 : vector<32x1xf32> to vector<32x32xf32>
    %187 = arith.subf %179, %186 : vector<32x32xf32>
    %188 = arith.mulf %187, %187 : vector<32x32xf32>
    %cst_68 = arith.constant dense<0.000000e+00> : vector<32xf32>
    %189 = vector.multi_reduction <add>, %188, %cst_68 [1] : vector<32x32xf32> to vector<32xf32>
    %190 = vector.shape_cast %189 : vector<32xf32> to vector<32x1xf32>
    %cst_69 = arith.constant 3.200000e+01 : f32
    %191 = vector.broadcast %cst_69 : f32 to vector<32x1xf32>
    %192 = arith.divf %190, %191 : vector<32x1xf32>
    %193 = vector.broadcast %185 : vector<32x1xf32> to vector<32x32xf32>
    %194 = arith.subf %179, %193 : vector<32x32xf32>
    %cst_70 = arith.constant 9.99999974E-6 : f32
    %195 = vector.broadcast %cst_70 : f32 to vector<32x1xf32>
    %196 = arith.addf %192, %195 : vector<32x1xf32>
    %197 = math.rsqrt %196 : vector<32x1xf32>
    %198 = vector.broadcast %197 : vector<32x1xf32> to vector<32x32xf32>
    %199 = arith.mulf %194, %198 : vector<32x32xf32>
    %200 = vector.broadcast %180 : vector<1x32xf32> to vector<32x32xf32>
    %201 = arith.mulf %199, %200 : vector<32x32xf32>
    %202 = vector.broadcast %181 : vector<1x32xf32> to vector<32x32xf32>
    %203 = arith.addf %201, %202 : vector<32x32xf32>
    %c336 = arith.constant 336 : index
    %c0_71 = arith.constant 0 : index
    %204 = vector.load %arg1[%c336, %c0_71] : memref<512x128xbf16, #tpu.memory_space<vmem>>, vector<32x16xbf16>
    %c368 = arith.constant 368 : index
    %c0_72 = arith.constant 0 : index
    %205 = vector.load %arg1[%c368, %c0_72] : memref<512x128xbf16, #tpu.memory_space<vmem>>, vector<16x1xbf16>
    %206 = arith.truncf %203 : vector<32x32xf32> to vector<32x32xbf16>
    %cst_73 = arith.constant dense<0.000000e+00> : vector<32x16xf32>
    %207 = tpu.matmul %206, %204, %cst_73 {dimension_numbers = #tpu.dot_dimension_numbers<[1], [0], [0], [1], [0, 0, 1, 1], [], []>} : vector<32x32xbf16>, vector<32x16xbf16>, vector<32x16xf32> -> vector<32x16xf32>
    %c80 = arith.constant 80 : index
    %c0_74 = arith.constant 0 : index
    %208 = vector.load %arg2[%c80, %c0_74] : memref<88x128xf32, #tpu.memory_space<vmem>>, vector<1x16xf32>
    %209 = vector.broadcast %208 : vector<1x16xf32> to vector<32x16xf32>
    %210 = arith.addf %207, %209 : vector<32x16xf32>
    %cst_75 = arith.constant 0.000000e+00 : f32
    %211 = vector.broadcast %cst_75 : f32 to vector<32x16xf32>
    %212 = arith.maximumf %210, %211 : vector<32x16xf32>
    %213 = arith.truncf %212 : vector<32x16xf32> to vector<32x16xbf16>
    %cst_76 = arith.constant dense<0.000000e+00> : vector<32x1xf32>
    %214 = tpu.matmul %213, %205, %cst_76 {dimension_numbers = #tpu.dot_dimension_numbers<[1], [0], [0], [1], [0, 0, 1, 1], [], []>} : vector<32x16xbf16>, vector<16x1xbf16>, vector<32x1xf32> -> vector<32x1xf32>
    %c81 = arith.constant 81 : index
    %c0_77 = arith.constant 0 : index
    %215 = vector.load %arg2[%c81, %c0_77] : memref<88x128xf32, #tpu.memory_space<vmem>>, vector<1x1xf32>
    %216 = vector.broadcast %215 : vector<1x1xf32> to vector<32x1xf32>
    %217 = arith.addf %214, %216 : vector<32x1xf32>
    %c0_78 = arith.constant 0 : index
    %c0_79 = arith.constant 0 : index
    %218 = vector.load %arg3[%c0_78, %c0_79] : memref<32x1xf32, #tpu.memory_space<vmem>>, vector<32x1xf32>
    tpu.vector_store %arg3[%c0_78, %c0_79], %217 {strides = array<i32>} : memref<32x1xf32, #tpu.memory_space<vmem>>, vector<32x1xf32>,
    return
  }
}

</mosaic_0001>

<llo_original>
// kernel: tpu_custom_call.1
$region0: #{tpu_custom_call.1}
  #allocation0 [shape = 'u32[]', space=smem, size = 0x4, offset = 0x4, fixed_abs, tag = 'smem constant byte address 0x4 - core index']
  #allocation1 [shape = 'u32[144,128]{1,0:T(1,128)}', space=vmem, size = 0x12000, scoped, tag = 'internal scratch']
  %s0 = inlined_call_operand.vmem [shape: f32[32,16], index: 0, kind: input, shape index: {}]
  %s1 = inlined_call_operand.hbm [shape: bf16[512,128], index: 1, kind: input, shape index: {}]
  %s2 = inlined_call_operand.hbm [shape: f32[88,128], index: 2, kind: input, shape index: {}]
  %s3 = inlined_call_operand.vmem [shape: f32[32,1], index: 3, kind: output, shape index: {}]
  %s4 = sld [smem:[#allocation0]]
  $region30: #{tpu_custom_call.1} parent=0
    _
  %s6 = ssub.s32 1, %s4
  %s7 = scalar_select 0, %s6, %s4
  $region1: #{tpu_custom_call.1} parent=0
    #allocation2 [shape = 'u8[131072]{0}', space=vmem, size = 0x20000, scoped, tag = 'input window, operand 1, single buffered']
    #allocation3 [shape = 's32[1]{0}', space=sflag, size = 0x4, scoped, tag = 'scoped memory for tpu_custom_call.1']
    #allocation4 [shape = 'u8[45056]{0}', space=vmem, size = 0xb000, scoped, tag = 'input window, operand 2, single buffered']
    #allocation5 [shape = 's32[1]{0}', space=sflag, size = 0x4, scoped, tag = 'scoped memory for tpu_custom_call.1']
    %8 = vsyncpa [#allocation3], 0
    %9 = vsyncpa [#allocation5], 0
    // Predicated region
    $region2: #{tpu_custom_call.1} parent=1 // pred_check
      _
    $region3: #{tpu_custom_call.1} parent=1 // pred_check_branch
      %11 = sbr.rel (0) target = $region5
    $region4: #{tpu_custom_call.1} parent=1 // pred_region
      _
    $region5: #{tpu_custom_call.1} parent=1 // pred_fallthru
      _
    // Predicated region
    $region6: #{tpu_custom_call.1} parent=1 // pred_check
      _
    $region7: #{tpu_custom_call.1} parent=1 // pred_check_branch
      %13 = sbr.rel (0) target = $region9
    $region8: #{tpu_custom_call.1} parent=1 // pred_region
      %s15 = ssub.s32 4096, 4096
      %16 = vsyncadd [#allocation3], %s15
      %s17 = sshll.u32 [#allocation2], 4
      %s18 = int_to_ptr.vmem [resolvable:$true] %s17
      %23 = dma.hbm_to_vmem [thread:$0]  %s1, 4096, %s18, [#allocation3], 64, 64, 4
    $region9: #{tpu_custom_call.1} parent=1 // pred_fallthru
      _
    // Predicated region
    $region10: #{tpu_custom_call.1} parent=1 // pred_check
      _
    $region11: #{tpu_custom_call.1} parent=1 // pred_check_branch
      %25 = sbr.rel (0) target = $region13
    $region12: #{tpu_custom_call.1} parent=1 // pred_region
      %s27 = ssub.s32 1408, 1408
      %28 = vsyncadd [#allocation5], %s27
      %s29 = sshll.u32 [#allocation4], 4
      %s30 = int_to_ptr.vmem [resolvable:$true] %s29
      %35 = dma.hbm_to_vmem [thread:$0]  %s2, 1408, %s30, [#allocation5], 128, 128, 8
    $region13: #{tpu_custom_call.1} parent=1 // pred_fallthru
      _
    // Predicated region
    $region14: #{tpu_custom_call.1} parent=1 // pred_check
      _
    $region15: #{tpu_custom_call.1} parent=1 // pred_check_branch
      %37 = sbr.rel (0) target = $region17
    $region16: #{tpu_custom_call.1} parent=1 // pred_region
      %38 = dma.done [#allocation3], 4096
    $region17: #{tpu_custom_call.1} parent=1 // pred_fallthru
      _
    // Predicated region
    $region18: #{tpu_custom_call.1} parent=1 // pred_check
      _
    $region19: #{tpu_custom_call.1} parent=1 // pred_check_branch
      %40 = sbr.rel (0) target = $region21
    $region20: #{tpu_custom_call.1} parent=1 // pred_region
      %41 = dma.done [#allocation5], 1408
    $region21: #{tpu_custom_call.1} parent=1 // pred_fallthru
      _
    %v43 = vld [vmem:[#allocation4] sm:$0xff]
    %v44 = vld [vmem:[#allocation4 + $0x8] sm:$0xff]
    %v45 = vld [vmem:[#allocation4 + $0x10] sm:$0xff]
    %v46 = vld [vmem:[#allocation4 + $0x18] sm:$0xff]
    %v47 = vld [vmem:[#allocation2 + $0xc0] sm:$0xf]
    %v48 = vld [vmem:[#allocation2 + $0xc4] sm:$0xf]
    %v49 = vld [vmem:[#allocation2 + $0xc8] sm:$0xf]
    %v50 = vld [vmem:[#allocation2 + $0xcc] sm:$0xf]
    %v51 = vld [vmem:[#allocation2 + $0xd0] sm:$0xf]
    %v52 = vld [vmem:[#allocation2 + $0xd4] sm:$0xf]
    %v53 = vld [vmem:[#allocation2 + $0xd8] sm:$0xf]
    %v54 = vld [vmem:[#allocation2 + $0xdc] sm:$0xf]
    %v55 = vld [vmem:[#allocation2 + $0xe0] sm:$0xf]
    %v56 = vld [vmem:[#allocation2 + $0xe4] sm:$0xf]
    %v57 = vld [vmem:[#allocation2 + $0xe8] sm:$0xf]
    %v58 = vld [vmem:[#allocation2 + $0xec] sm:$0xf]
    %v59 = vld [vmem:[#allocation2 + $0xf0] sm:$0xf]
    %v60 = vld [vmem:[#allocation2 + $0xf4] sm:$0xf]
    %v61 = vld [vmem:[#allocation2 + $0xf8] sm:$0xf]
    %v62 = vld [vmem:[#allocation2 + $0xfc] sm:$0xf]
    %v63 = vld [vmem:[#allocation4 + $0x20] sm:$0xff]
    %v64 = vld [vmem:[#allocation4 + $0x28] sm:$0xff]
    %v65 = vld [vmem:[#allocation4 + $0x30] sm:$0xff]
    %v66 = vld [vmem:[#allocation4 + $0x38] sm:$0xff]
    %v67 = vld [vmem:[#allocation2 + $0xa0] sm:$0xf]
    %v68 = vld [vmem:[#allocation2 + $0xa4] sm:$0xf]
    %v69 = vld [vmem:[%s0] sm:$0xff]
    %v70 = vld [vmem:[%s0 + $0x8] sm:$0xff]
    %v71 = vld [vmem:[%s0 + $0x10] sm:$0xff]
    %v72 = vld [vmem:[%s0 + $0x18] sm:$0xff]
    %v73 = vpack.c.bf16 %v70, %v69
    %v74 = vpack.c.bf16 %v72, %v71
    %v77 = vunpack.c.l.b16 %v67
    %v78 = vunpack.c.l.b16 %v68
    %v79 = vpack.c.b16 %v78, %v77
    %vm81 = vcmask 130048
    %v83 = vsel %vm81, %v73, 0
    %v86 = vsel %vm81, %v74, 0
    %88 = vmatprep.subr.bf16.mxu0 0
    %89 = vmatpush1.bf16.msra.mxu0 0
    %90 = vmatprep.subr.bf16.mxu0 0
    %91 = vmatpush1.bf16.msra.mxu0 0
    %92 = vmatprep.subr.bf16.mxu0 0
    %93 = vmatpush1.bf16.msra.mxu0 0
    %94 = vmatprep.subr.bf16.mxu0 0
    %95 = vmatpush1.bf16.msra.mxu0 0
    %96 = vmatprep.subr.bf16.mxu0 0
    %97 = vmatpush1.bf16.msra.mxu0 0
    %98 = vmatprep.subr.bf16.mxu0 0
    %99 = vmatpush1.bf16.msra.mxu0 0
    %100 = vmatprep.subr.bf16.mxu0 0
    %101 = vmatpush1.bf16.msra.mxu0 0
    %102 = vmatprep.subr.bf16.mxu0 0
    %103 = vmatpush1.bf16.msra.mxu0 %v79
    %104 = vmatprep.subr.bf16.mxu0 0
    %105 = vmatpush2.bf16.msra.mxu0 0
    %106 = vmatprep.subr.bf16.mxu0 0
    %107 = vmatpush2.bf16.msra.mxu0 0
    %108 = vmatprep.subr.bf16.mxu0 0
    %109 = vmatpush2.bf16.msra.mxu0 0
    %110 = vmatprep.subr.bf16.mxu0 0
    %111 = vmatpush2.bf16.msra.mxu0 0
    %112 = vmatprep.subr.bf16.mxu0 0
    %113 = vmatpush2.bf16.msra.mxu0 0
    %114 = vmatprep.subr.bf16.mxu0 0
    %115 = vmatpush2.bf16.msra.mxu0 0
    %116 = vmatprep.subr.bf16.mxu0 0
    %117 = vmatpush2.bf16.msra.mxu0 0
    %118 = vmatprep.subr.bf16.mxu0 0
    %119 = vmatpush2.bf16.msra.mxu0 0
    %120 = vmatprep.mubr.bf16.mxu0 0
    %121 = vmatmul.mubr.bf16.gmra.mxu0 %v83
    %v122 = vpop.f32.mrf.mxu0
    %v123 = vadd.f32 %v63, %v122
    %v124 = vpop.f32.mrf.mxu0
    %v125 = vpop.f32.mrf.mxu0
    %v126 = vadd.f32 %v64, %v125
    %v127 = vpop.f32.mrf.mxu0
    %128 = vmatprep.mubr.bf16.mxu0 0
    %129 = vmatmul.mubr.bf16.gmra.mxu0 %v86
    %v130 = vpop.f32.mrf.mxu0
    %v131 = vadd.f32 %v65, %v130
    %v132 = vpop.f32.mrf.mxu0
    %v133 = vpop.f32.mrf.mxu0
    %v134 = vadd.f32 %v66, %v133
    %v135 = vpop.f32.mrf.mxu0
    %136 = vdwg.mxu0
    %v137 = vld [vmem:[#allocation2] sm:$0xf]
    %v138 = vld [vmem:[#allocation2 + $0x4] sm:$0xf]
    %v139 = vld [vmem:[#allocation2 + $0x8] sm:$0xf]
    %v140 = vld [vmem:[#allocation2 + $0xc] sm:$0xf]
    %v141 = vld [vmem:[#allocation2 + $0x10] sm:$0xf]
    %v142 = vld [vmem:[#allocation2 + $0x14] sm:$0xf]
    %v143 = vld [vmem:[#allocation2 + $0x18] sm:$0xf]
    %v144 = vld [vmem:[#allocation2 + $0x1c] sm:$0xf]
    %v145 = vld [vmem:[#allocation2 + $0x20] sm:$0xf]
    %v146 = vld [vmem:[#allocation2 + $0x24] sm:$0xf]
    %v147 = vld [vmem:[#allocation2 + $0x28] sm:$0xf]
    %v148 = vld [vmem:[#allocation2 + $0x2c] sm:$0xf]
    %v149 = vld [vmem:[#allocation2 + $0x30] sm:$0xf]
    %v150 = vld [vmem:[#allocation2 + $0x34] sm:$0xf]
    %v151 = vld [vmem:[#allocation2 + $0x38] sm:$0xf]
    %v152 = vld [vmem:[#allocation2 + $0x3c] sm:$0xf]
    %v153 = vld [vmem:[#allocation2 + $0x40] sm:$0xf]
    %v154 = vld [vmem:[#allocation2 + $0x44] sm:$0xf]
    %v155 = vld [vmem:[#allocation2 + $0x48] sm:$0xf]
    %v156 = vld [vmem:[#allocation2 + $0x4c] sm:$0xf]
    %v157 = vpack.c.bf16 %v126, %v123
    %v158 = vpack.c.bf16 %v134, %v131
    %v159 = vld [vmem:[#allocation4 + $0x40] sm:$0x1]
    %v160 = vlaneseq
    %v161 = vshrl.u32 %v160, 7
    %v162 = vsub.s32 0, %v161
    %v163 = vrot.slane %v159, %v162
    %v168 = vunpack.c.l.b16 %v137
    %v169 = vunpack.c.l.b16 %v138
    %v170 = vunpack.c.l.b16 %v139
    %v171 = vunpack.c.l.b16 %v140
    %v172 = vpack.c.b16 %v169, %v168
    %v173 = vpack.c.b16 %v171, %v170
    %vm176 = vcmask 261120
    %v178 = vsel %vm176, %v157, 0
    %v181 = vsel %vm176, %v158, 0
    %183 = vmatprep.subr.bf16.mxu0 0
    %184 = vmatpush1.bf16.msra.mxu0 0
    %185 = vmatprep.subr.bf16.mxu0 0
    %186 = vmatpush1.bf16.msra.mxu0 0
    %187 = vmatprep.subr.bf16.mxu0 0
    %188 = vmatpush1.bf16.msra.mxu0 0
    %189 = vmatprep.subr.bf16.mxu0 0
    %190 = vmatpush1.bf16.msra.mxu0 0
    %191 = vmatprep.subr.bf16.mxu0 0
    %192 = vmatpush1.bf16.msra.mxu0 0
    %193 = vmatprep.subr.bf16.mxu0 0
    %194 = vmatpush1.bf16.msra.mxu0 0
    %195 = vmatprep.subr.bf16.mxu0 0
    %196 = vmatpush1.bf16.msra.mxu0 %v173
    %197 = vmatprep.subr.bf16.mxu0 0
    %198 = vmatpush1.bf16.msra.mxu0 %v172
    %199 = vmatprep.subr.bf16.mxu0 0
    %200 = vmatpush2.bf16.msra.mxu0 0
    %201 = vmatprep.subr.bf16.mxu0 0
    %202 = vmatpush2.bf16.msra.mxu0 0
    %203 = vmatprep.subr.bf16.mxu0 0
    %204 = vmatpush2.bf16.msra.mxu0 0
    %205 = vmatprep.subr.bf16.mxu0 0
    %206 = vmatpush2.bf16.msra.mxu0 0
    %207 = vmatprep.subr.bf16.mxu0 0
    %208 = vmatpush2.bf16.msra.mxu0 0
    %209 = vmatprep.subr.bf16.mxu0 0
    %210 = vmatpush2.bf16.msra.mxu0 0
    %211 = vmatprep.subr.bf16.mxu0 0
    %212 = vmatpush2.bf16.msra.mxu0 0
    %213 = vmatprep.subr.bf16.mxu0 0
    %214 = vmatpush2.bf16.msra.mxu0 0
    %215 = vmatprep.mubr.bf16.mxu0 0
    %216 = vmatmul.mubr.bf16.gmra.mxu0 %v178
    %v217 = vpop.f32.mrf.mxu0
    %v218 = vadd.f32 %v163, %v217
    %v219 = vpop.f32.mrf.mxu0
    %v220 = vpop.f32.mrf.mxu0
    %v221 = vadd.f32 %v163, %v220
    %v222 = vpop.f32.mrf.mxu0
    %223 = vmatprep.mubr.bf16.mxu0 0
    %224 = vmatmul.mubr.bf16.gmra.mxu0 %v181
    %v225 = vpop.f32.mrf.mxu0
    %v226 = vadd.f32 %v163, %v225
    %v227 = vpop.f32.mrf.mxu0
    %v228 = vpop.f32.mrf.mxu0
    %v229 = vadd.f32 %v163, %v228
    %v230 = vpop.f32.mrf.mxu0
    %231 = vdwg.mxu0
    %v232 = vpack.c.bf16 %v221, %v218
    %v233 = vpack.c.bf16 %v229, %v226
    %v250 = vunpack.c.l.b16 %v47
    %v251 = vunpack.c.l.b16 %v48
    %v252 = vunpack.c.l.b16 %v49
    %v253 = vunpack.c.l.b16 %v50
    %v254 = vunpack.c.l.b16 %v51
    %v255 = vunpack.c.l.b16 %v52
    %v256 = vunpack.c.l.b16 %v53
    %v257 = vunpack.c.l.b16 %v54
    %v258 = vunpack.c.l.b16 %v55
    %v259 = vunpack.c.l.b16 %v56
    %v260 = vunpack.c.l.b16 %v57
    %v261 = vunpack.c.l.b16 %v58
    %v262 = vunpack.c.l.b16 %v59
    %v263 = vunpack.c.l.b16 %v60
    %v264 = vunpack.c.l.b16 %v61
    %v265 = vunpack.c.l.b16 %v62
    %v266 = vpack.c.b16 %v251, %v250
    %v267 = vpack.c.b16 %v253, %v252
    %v268 = vpack.c.b16 %v255, %v254
    %v269 = vpack.c.b16 %v257, %v256
    %v270 = vpack.c.b16 %v259, %v258
    %v271 = vpack.c.b16 %v261, %v260
    %v272 = vpack.c.b16 %v263, %v262
    %v273 = vpack.c.b16 %v265, %v264
    %274 = vrot.lane.b32.xlu0 %v266, 32
    %v275 = vpop.permute.xlu0 %274
    %276 = vrot.lane.b32.xlu0 %v267, 32
    %v277 = vpop.permute.xlu0 %276
    %278 = vrot.lane.b32.xlu0 %v268, 32
    %v279 = vpop.permute.xlu0 %278
    %280 = vrot.lane.b32.xlu0 %v269, 32
    %v281 = vpop.permute.xlu0 %280
    %282 = vrot.lane.b32.xlu0 %v270, 32
    %v283 = vpop.permute.xlu0 %282
    %284 = vrot.lane.b32.xlu0 %v271, 32
    %v285 = vpop.permute.xlu0 %284
    %286 = vrot.lane.b32.xlu0 %v272, 32
    %v287 = vpop.permute.xlu0 %286
    %288 = vrot.lane.b32.xlu0 %v273, 32
    %v289 = vpop.permute.xlu0 %288
    %v298 = vmul.bf16 %v232, %v275
    %v299 = vmul.bf16 %v233, %v277
    %v300 = vmul.bf16 %v232, %v279
    %v301 = vmul.bf16 %v233, %v281
    %v302 = vmul.bf16 %v232, %v283
    %v303 = vmul.bf16 %v233, %v285
    %v304 = vmul.bf16 %v232, %v287
    %v305 = vmul.bf16 %v233, %v289
    %306 = vrot.lane.b32.xlu0 %v266, 64
    %v307 = vpop.permute.xlu0 %306
    %308 = vrot.lane.b32.xlu0 %v267, 64
    %v309 = vpop.permute.xlu0 %308
    %310 = vrot.lane.b32.xlu0 %v268, 64
    %v311 = vpop.permute.xlu0 %310
    %312 = vrot.lane.b32.xlu0 %v269, 64
    %v313 = vpop.permute.xlu0 %312
    %314 = vrot.lane.b32.xlu0 %v270, 64
    %v315 = vpop.permute.xlu0 %314
    %316 = vrot.lane.b32.xlu0 %v271, 64
    %v317 = vpop.permute.xlu0 %316
    %318 = vrot.lane.b32.xlu0 %v272, 64
    %v319 = vpop.permute.xlu0 %318
    %320 = vrot.lane.b32.xlu0 %v273, 64
    %v321 = vpop.permute.xlu0 %320
    %v330 = vmul.bf16 %v232, %v307
    %v331 = vmul.bf16 %v233, %v309
    %v332 = vmul.bf16 %v232, %v311
    %v333 = vmul.bf16 %v233, %v313
    %v334 = vmul.bf16 %v232, %v315
    %v335 = vmul.bf16 %v233, %v317
    %v336 = vmul.bf16 %v232, %v319
    %v337 = vmul.bf16 %v233, %v321
    %346 = vrot.lane.b32.xlu0 %v298, 96
    %v347 = vpop.permute.xlu0 %346
    %348 = vrot.lane.b32.xlu0 %v299, 96
    %v349 = vpop.permute.xlu0 %348
    %350 = vrot.lane.b32.xlu0 %v300, 96
    %v351 = vpop.permute.xlu0 %350
    %352 = vrot.lane.b32.xlu0 %v301, 96
    %v353 = vpop.permute.xlu0 %352
    %354 = vrot.lane.b32.xlu0 %v302, 96
    %v355 = vpop.permute.xlu0 %354
    %356 = vrot.lane.b32.xlu0 %v303, 96
    %v357 = vpop.permute.xlu0 %356
    %358 = vrot.lane.b32.xlu0 %v304, 96
    %v359 = vpop.permute.xlu0 %358
    %360 = vrot.lane.b32.xlu0 %v305, 96
    %v361 = vpop.permute.xlu0 %360
    %v363 = vsel %vm176, %v232, 0
    %v366 = vsel %vm176, %v233, 0
    %v369 = vsel %vm176, %v347, 0
    %v372 = vsel %vm176, %v349, 0
    %v375 = vsel %vm176, %v351, 0
    %v378 = vsel %vm176, %v353, 0
    %v381 = vsel %vm176, %v355, 0
    %v384 = vsel %vm176, %v357, 0
    %v387 = vsel %vm176, %v359, 0
    %v390 = vsel %vm176, %v361, 0
    %392 = vmatprep.subr.bf16.mxu0 0
    %393 = vmatpush1.bf16.xpose.msra.mxu0 %v390
    %394 = vmatprep.subr.bf16.mxu0 0
    %395 = vmatpush1.bf16.xpose.msra.mxu0 %v387
    %396 = vmatprep.subr.bf16.mxu0 0
    %397 = vmatpush1.bf16.xpose.msra.mxu0 %v384
    %398 = vmatprep.subr.bf16.mxu0 0
    %399 = vmatpush1.bf16.xpose.msra.mxu0 %v381
    %400 = vmatprep.subr.bf16.mxu0 0
    %401 = vmatpush1.bf16.xpose.msra.mxu0 %v378
    %402 = vmatprep.subr.bf16.mxu0 0
    %403 = vmatpush1.bf16.xpose.msra.mxu0 %v375
    %404 = vmatprep.subr.bf16.mxu0 0
    %405 = vmatpush1.bf16.xpose.msra.mxu0 %v372
    %406 = vmatprep.subr.bf16.mxu0 0
    %407 = vmatpush1.bf16.xpose.msra.mxu0 %v369
    %408 = vmatprep.subr.bf16.mxu0 0
    %409 = vmatpush2.bf16.xpose.msra.mxu0 0
    %410 = vmatprep.subr.bf16.mxu0 0
    %411 = vmatpush2.bf16.xpose.msra.mxu0 0
    %412 = vmatprep.subr.bf16.mxu0 0
    %413 = vmatpush2.bf16.xpose.msra.mxu0 0
    %414 = vmatprep.subr.bf16.mxu0 0
    %415 = vmatpush2.bf16.xpose.msra.mxu0 0
    %416 = vmatprep.subr.bf16.mxu0 0
    %417 = vmatpush2.bf16.xpose.msra.mxu0 0
    %418 = vmatprep.subr.bf16.mxu0 0
    %419 = vmatpush2.bf16.xpose.msra.mxu0 0
    %420 = vmatprep.subr.bf16.mxu0 0
    %421 = vmatpush2.bf16.xpose.msra.mxu0 0
    %422 = vmatprep.subr.bf16.mxu0 0
    %423 = vmatpush2.bf16.xpose.msra.mxu0 0
    %424 = vmatprep.mubr.bf16.mxu0 0
    %425 = vmatmul.mubr.bf16.gmra.mxu0 %v363
    %v426 = vpop.f32.mrf.mxu0
    %v427 = vadd.f32 %v43, %v426
    %v428 = vpop.f32.mrf.mxu0
    %v429 = vpop.f32.mrf.mxu0
    %v430 = vadd.f32 %v44, %v429
    %v431 = vpop.f32.mrf.mxu0
    %432 = vmatprep.mubr.bf16.mxu0 0
    %433 = vmatmul.mubr.bf16.gmra.mxu0 %v366
    %v434 = vpop.f32.mrf.mxu0
    %v435 = vadd.f32 %v45, %v434
    %v436 = vpop.f32.mrf.mxu0
    %v437 = vpop.f32.mrf.mxu0
    %v438 = vadd.f32 %v46, %v437
    %v439 = vpop.f32.mrf.mxu0
    %440 = vdwg.mxu0
    %441 = vmax.xlane.f32.xlu0 %v427
    %v442 = vpop.xlane.xlu0 %441
    %443 = vmax.xlane.f32.xlu0 %v430
    %v444 = vpop.xlane.xlu0 %443
    %445 = vmax.xlane.f32.xlu0 %v435
    %v446 = vpop.xlane.xlu0 %445
    %447 = vmax.xlane.f32.xlu0 %v438
    %v448 = vpop.xlane.xlu0 %447
    %v449 = vsub.f32 %v427, %v442
    %v450 = vsub.f32 %v430, %v444
    %v451 = vsub.f32 %v435, %v446
    %v452 = vsub.f32 %v438, %v448
    %v453 = vmul.f32 %v449, 1.442695
    %v454 = vpow.pop %v453
    %v455 = vmul.f32 %v450, 1.442695
    %v456 = vpow.pop %v455
    %v457 = vmul.f32 %v451, 1.442695
    %v458 = vpow.pop %v457
    %v459 = vmul.f32 %v452, 1.442695
    %v460 = vpow.pop %v459
    %v461 = vpack.c.bf16 %v456, %v454
    %v462 = vpack.c.bf16 %v460, %v458
    %471 = vrot.lane.b32.xlu0 %v330, 64
    %v472 = vpop.permute.xlu0 %471
    %473 = vrot.lane.b32.xlu0 %v331, 64
    %v474 = vpop.permute.xlu0 %473
    %475 = vrot.lane.b32.xlu0 %v332, 64
    %v476 = vpop.permute.xlu0 %475
    %477 = vrot.lane.b32.xlu0 %v333, 64
    %v478 = vpop.permute.xlu0 %477
    %479 = vrot.lane.b32.xlu0 %v334, 64
    %v480 = vpop.permute.xlu0 %479
    %481 = vrot.lane.b32.xlu0 %v335, 64
    %v482 = vpop.permute.xlu0 %481
    %483 = vrot.lane.b32.xlu0 %v336, 64
    %v484 = vpop.permute.xlu0 %483
    %485 = vrot.lane.b32.xlu0 %v337, 64
    %v486 = vpop.permute.xlu0 %485
    %495 = vmatprep.subr.bf16.mxu0 0
    %496 = vmatpush1.bf16.msra.mxu0 %v486
    %497 = vmatprep.subr.bf16.mxu0 0
    %498 = vmatpush1.bf16.msra.mxu0 %v484
    %499 = vmatprep.subr.bf16.mxu0 0
    %500 = vmatpush1.bf16.msra.mxu0 %v482
    %501 = vmatprep.subr.bf16.mxu0 0
    %502 = vmatpush1.bf16.msra.mxu0 %v480
    %503 = vmatprep.subr.bf16.mxu0 0
    %504 = vmatpush1.bf16.msra.mxu0 %v478
    %505 = vmatprep.subr.bf16.mxu0 0
    %506 = vmatpush1.bf16.msra.mxu0 %v476
    %507 = vmatprep.subr.bf16.mxu0 0
    %508 = vmatpush1.bf16.msra.mxu0 %v474
    %509 = vmatprep.subr.bf16.mxu0 0
    %510 = vmatpush1.bf16.msra.mxu0 %v472
    %511 = vmatprep.subr.bf16.mxu0 0
    %512 = vmatpush2.bf16.msra.mxu0 0
    %513 = vmatprep.subr.bf16.mxu0 0
    %514 = vmatpush2.bf16.msra.mxu0 0
    %515 = vmatprep.subr.bf16.mxu0 0
    %516 = vmatpush2.bf16.msra.mxu0 0
    %517 = vmatprep.subr.bf16.mxu0 0
    %518 = vmatpush2.bf16.msra.mxu0 0
    %519 = vmatprep.subr.bf16.mxu0 0
    %520 = vmatpush2.bf16.msra.mxu0 0
    %521 = vmatprep.subr.bf16.mxu0 0
    %522 = vmatpush2.bf16.msra.mxu0 0
    %523 = vmatprep.subr.bf16.mxu0 0
    %524 = vmatpush2.bf16.msra.mxu0 0
    %525 = vmatprep.subr.bf16.mxu0 0
    %526 = vmatpush2.bf16.msra.mxu0 0
    %527 = vmatprep.mubr.bf16.mxu0 0
    %528 = vmatmul.mubr.bf16.gmra.mxu0 %v461
    %v529 = vpop.f32.mrf.mxu0
    %v530 = vadd.f32 0.0, %v529
    %v531 = vpop.f32.mrf.mxu0
    %v532 = vpop.f32.mrf.mxu0
    %v533 = vadd.f32 0.0, %v532
    %v534 = vpop.f32.mrf.mxu0
    %535 = vmatprep.mubr.bf16.mxu0 0
    %536 = vmatmul.mubr.bf16.gmra.mxu0 %v462
    %v537 = vpop.f32.mrf.mxu0
    %v538 = vadd.f32 0.0, %v537
    %v539 = vpop.f32.mrf.mxu0
    %v540 = vpop.f32.mrf.mxu0
    %v541 = vadd.f32 0.0, %v540
    %v542 = vpop.f32.mrf.mxu0
    %543 = vdwg.mxu0
    %552 = vmatprep.subr.bf16.mxu0 0
    %553 = vmatpush1.bf16.msra.mxu0 %v273
    %554 = vmatprep.subr.bf16.mxu0 0
    %555 = vmatpush1.bf16.msra.mxu0 %v272
    %556 = vmatprep.subr.bf16.mxu0 0
    %557 = vmatpush1.bf16.msra.mxu0 %v271
    %558 = vmatprep.subr.bf16.mxu0 0
    %559 = vmatpush1.bf16.msra.mxu0 %v270
    %560 = vmatprep.subr.bf16.mxu0 0
    %561 = vmatpush1.bf16.msra.mxu0 %v269
    %562 = vmatprep.subr.bf16.mxu0 0
    %563 = vmatpush1.bf16.msra.mxu0 %v268
    %564 = vmatprep.subr.bf16.mxu0 0
    %565 = vmatpush1.bf16.msra.mxu0 %v267
    %566 = vmatprep.subr.bf16.mxu0 0
    %567 = vmatpush1.bf16.msra.mxu0 %v266
    %568 = vmatprep.subr.bf16.mxu0 0
    %569 = vmatpush2.bf16.msra.mxu0 0
    %570 = vmatprep.subr.bf16.mxu0 0
    %571 = vmatpush2.bf16.msra.mxu0 0
    %572 = vmatprep.subr.bf16.mxu0 0
    %573 = vmatpush2.bf16.msra.mxu0 0
    %574 = vmatprep.subr.bf16.mxu0 0
    %575 = vmatpush2.bf16.msra.mxu0 0
    %576 = vmatprep.subr.bf16.mxu0 0
    %577 = vmatpush2.bf16.msra.mxu0 0
    %578 = vmatprep.subr.bf16.mxu0 0
    %579 = vmatpush2.bf16.msra.mxu0 0
    %580 = vmatprep.subr.bf16.mxu0 0
    %581 = vmatpush2.bf16.msra.mxu0 0
    %582 = vmatprep.subr.bf16.mxu0 0
    %583 = vmatpush2.bf16.msra.mxu0 0
    %584 = vmatprep.mubr.bf16.mxu0 0
    %585 = vmatmul.mubr.bf16.gmra.mxu0 %v461
    %v586 = vpop.f32.mrf.mxu0
    %v587 = vadd.f32 0.0, %v586
    %v588 = vpop.f32.mrf.mxu0
    %v589 = vpop.f32.mrf.mxu0
    %v590 = vadd.f32 0.0, %v589
    %v591 = vpop.f32.mrf.mxu0
    %592 = vmatprep.mubr.bf16.mxu0 0
    %593 = vmatmul.mubr.bf16.gmra.mxu0 %v462
    %v594 = vpop.f32.mrf.mxu0
    %v595 = vadd.f32 0.0, %v594
    %v596 = vpop.f32.mrf.mxu0
    %v597 = vpop.f32.mrf.mxu0
    %v598 = vadd.f32 0.0, %v597
    %v599 = vpop.f32.mrf.mxu0
    %600 = vdwg.mxu0
    %v601 = vrcp.pop %v587
    %v602 = vrcp.pop %v590
    %v603 = vrcp.pop %v595
    %v604 = vrcp.pop %v598
    %v605 = vmul.f32 %v530, %v601
    %v606 = vmul.f32 %v533, %v602
    %v607 = vmul.f32 %v538, %v603
    %v608 = vmul.f32 %v541, %v604
    %v609 = vpack.c.bf16 %v606, %v605
    %v610 = vpack.c.bf16 %v608, %v607
    %v611 = vld [vmem:[#allocation4 + $0x41] sm:$0x1]
    %v612 = vlaneseq
    %v613 = vshrl.u32 %v612, 7
    %v614 = vsub.s32 0, %v613
    %v615 = vrot.slane %v611, %v614
    %v620 = vunpack.c.l.b16 %v141
    %v621 = vunpack.c.l.b16 %v142
    %v622 = vunpack.c.l.b16 %v143
    %v623 = vunpack.c.l.b16 %v144
    %v624 = vpack.c.b16 %v621, %v620
    %v625 = vpack.c.b16 %v623, %v622
    %v629 = vsel %vm176, %v609, 0
    %v632 = vsel %vm176, %v610, 0
    %634 = vmatprep.subr.bf16.mxu0 0
    %635 = vmatpush1.bf16.msra.mxu0 0
    %636 = vmatprep.subr.bf16.mxu0 0
    %637 = vmatpush1.bf16.msra.mxu0 0
    %638 = vmatprep.subr.bf16.mxu0 0
    %639 = vmatpush1.bf16.msra.mxu0 0
    %640 = vmatprep.subr.bf16.mxu0 0
    %641 = vmatpush1.bf16.msra.mxu0 0
    %642 = vmatprep.subr.bf16.mxu0 0
    %643 = vmatpush1.bf16.msra.mxu0 0
    %644 = vmatprep.subr.bf16.mxu0 0
    %645 = vmatpush1.bf16.msra.mxu0 0
    %646 = vmatprep.subr.bf16.mxu0 0
    %647 = vmatpush1.bf16.msra.mxu0 %v625
    %648 = vmatprep.subr.bf16.mxu0 0
    %649 = vmatpush1.bf16.msra.mxu0 %v624
    %650 = vmatprep.subr.bf16.mxu0 0
    %651 = vmatpush2.bf16.msra.mxu0 0
    %652 = vmatprep.subr.bf16.mxu0 0
    %653 = vmatpush2.bf16.msra.mxu0 0
    %654 = vmatprep.subr.bf16.mxu0 0
    %655 = vmatpush2.bf16.msra.mxu0 0
    %656 = vmatprep.subr.bf16.mxu0 0
    %657 = vmatpush2.bf16.msra.mxu0 0
    %658 = vmatprep.subr.bf16.mxu0 0
    %659 = vmatpush2.bf16.msra.mxu0 0
    %660 = vmatprep.subr.bf16.mxu0 0
    %661 = vmatpush2.bf16.msra.mxu0 0
    %662 = vmatprep.subr.bf16.mxu0 0
    %663 = vmatpush2.bf16.msra.mxu0 0
    %664 = vmatprep.subr.bf16.mxu0 0
    %665 = vmatpush2.bf16.msra.mxu0 0
    %666 = vmatprep.mubr.bf16.mxu0 0
    %667 = vmatmul.mubr.bf16.gmra.mxu0 %v629
    %v668 = vpop.f32.mrf.mxu0
    %v669 = vadd.f32 %v615, %v668
    %v670 = vpop.f32.mrf.mxu0
    %v671 = vpop.f32.mrf.mxu0
    %v672 = vadd.f32 %v615, %v671
    %v673 = vpop.f32.mrf.mxu0
    %674 = vmatprep.mubr.bf16.mxu0 0
    %675 = vmatmul.mubr.bf16.gmra.mxu0 %v632
    %v676 = vpop.f32.mrf.mxu0
    %v677 = vadd.f32 %v615, %v676
    %v678 = vpop.f32.mrf.mxu0
    %v679 = vpop.f32.mrf.mxu0
    %v680 = vadd.f32 %v615, %v679
    %v681 = vpop.f32.mrf.mxu0
    %682 = vdwg.mxu0
    %v683 = vadd.f32 %v123, %v669
    %v684 = vadd.f32 %v126, %v672
    %v685 = vadd.f32 %v131, %v677
    %v686 = vadd.f32 %v134, %v680
    %v687 = vld [vmem:[#allocation4 + $0x42] sm:$0x1]
    %v688 = vld [vmem:[#allocation4 + $0x43] sm:$0x1]
    %v689 = vsel %vm176, %v683, 0.0
    %690 = vadd.xlane.f32.xlu0 %v689
    %v691 = vpop.xlane.xlu0 %690
    %v692 = vsel %vm176, %v684, 0.0
    %693 = vadd.xlane.f32.xlu0 %v692
    %v694 = vpop.xlane.xlu0 %693
    %v695 = vsel %vm176, %v685, 0.0
    %696 = vadd.xlane.f32.xlu0 %v695
    %v697 = vpop.xlane.xlu0 %696
    %v698 = vsel %vm176, %v686, 0.0
    %699 = vadd.xlane.f32.xlu0 %v698
    %v700 = vpop.xlane.xlu0 %699
    %v701 = vrcp.pop 32.0
    %v702 = vmul.f32 %v691, %v701
    %v703 = vmul.f32 %v694, %v701
    %v704 = vmul.f32 %v697, %v701
    %v705 = vmul.f32 %v700, %v701
    %v706 = vsub.f32 %v683, %v702
    %v707 = vsub.f32 %v684, %v703
    %v708 = vsub.f32 %v685, %v704
    %v709 = vsub.f32 %v686, %v705
    %v710 = vmul.f32 %v706, %v706
    %v711 = vmul.f32 %v707, %v707
    %v712 = vmul.f32 %v708, %v708
    %v713 = vmul.f32 %v709, %v709
    %v714 = vsel %vm176, %v710, 0.0
    %715 = vadd.xlane.f32.xlu0 %v714
    %v716 = vpop.xlane.xlu0 %715
    %v717 = vsel %vm176, %v711, 0.0
    %718 = vadd.xlane.f32.xlu0 %v717
    %v719 = vpop.xlane.xlu0 %718
    %v720 = vsel %vm176, %v712, 0.0
    %721 = vadd.xlane.f32.xlu0 %v720
    %v722 = vpop.xlane.xlu0 %721
    %v723 = vsel %vm176, %v713, 0.0
    %724 = vadd.xlane.f32.xlu0 %v723
    %v725 = vpop.xlane.xlu0 %724
    %v726 = vmul.f32 %v716, %v701
    %v727 = vmul.f32 %v719, %v701
    %v728 = vmul.f32 %v722, %v701
    %v729 = vmul.f32 %v725, %v701
    %v730 = vadd.f32 %v726, 1e-05
    %v731 = vadd.f32 %v727, 1e-05
    %v732 = vadd.f32 %v728, 1e-05
    %v733 = vadd.f32 %v729, 1e-05
    %v734 = vrsqrt.pop %v730
    %v735 = vrsqrt.pop %v731
    %v736 = vrsqrt.pop %v732
    %v737 = vrsqrt.pop %v733
    %v738 = vmul.f32 %v706, %v734
    %v739 = vmul.f32 %v707, %v735
    %v740 = vmul.f32 %v708, %v736
    %v741 = vmul.f32 %v709, %v737
    %v742 = vlaneseq
    %v743 = vshrl.u32 %v742, 7
    %v744 = vsub.s32 0, %v743
    %v745 = vrot.slane %v687, %v744
    %v746 = vmul.f32 %v738, %v745
    %v747 = vmul.f32 %v739, %v745
    %v748 = vmul.f32 %v740, %v745
    %v749 = vmul.f32 %v741, %v745
    %v750 = vlaneseq
    %v751 = vshrl.u32 %v750, 7
    %v752 = vsub.s32 0, %v751
    %v753 = vrot.slane %v688, %v752
    %v754 = vadd.f32 %v746, %v753
    %v755 = vadd.f32 %v747, %v753
    %v756 = vadd.f32 %v748, %v753
    %v757 = vadd.f32 %v749, %v753
    %v758 = vpack.c.bf16 %v755, %v754
    %v759 = vpack.c.bf16 %v757, %v756
    %v760 = vld [vmem:[#allocation4 + $0x46] sm:$0x1]
    %v761 = vlaneseq
    %v762 = vshrl.u32 %v761, 7
    %v763 = vsub.s32 0, %v762
    %v764 = vrot.slane %v760, %v763
    %v769 = vunpack.c.l.b16 %v145
    %v770 = vunpack.c.l.b16 %v146
    %v771 = vunpack.c.l.b16 %v147
    %v772 = vunpack.c.l.b16 %v148
    %v773 = vpack.c.b16 %v770, %v769
    %v774 = vpack.c.b16 %v772, %v771
    %v778 = vsel %vm176, %v758, 0
    %v781 = vsel %vm176, %v759, 0
    %783 = vmatprep.subr.bf16.mxu0 0
    %784 = vmatpush1.bf16.msra.mxu0 0
    %785 = vmatprep.subr.bf16.mxu0 0
    %786 = vmatpush1.bf16.msra.mxu0 0
    %787 = vmatprep.subr.bf16.mxu0 0
    %788 = vmatpush1.bf16.msra.mxu0 0
    %789 = vmatprep.subr.bf16.mxu0 0
    %790 = vmatpush1.bf16.msra.mxu0 0
    %791 = vmatprep.subr.bf16.mxu0 0
    %792 = vmatpush1.bf16.msra.mxu0 0
    %793 = vmatprep.subr.bf16.mxu0 0
    %794 = vmatpush1.bf16.msra.mxu0 0
    %795 = vmatprep.subr.bf16.mxu0 0
    %796 = vmatpush1.bf16.msra.mxu0 %v774
    %797 = vmatprep.subr.bf16.mxu0 0
    %798 = vmatpush1.bf16.msra.mxu0 %v773
    %799 = vmatprep.subr.bf16.mxu0 0
    %800 = vmatpush2.bf16.msra.mxu0 0
    %801 = vmatprep.subr.bf16.mxu0 0
    %802 = vmatpush2.bf16.msra.mxu0 0
    %803 = vmatprep.subr.bf16.mxu0 0
    %804 = vmatpush2.bf16.msra.mxu0 0
    %805 = vmatprep.subr.bf16.mxu0 0
    %806 = vmatpush2.bf16.msra.mxu0 0
    %807 = vmatprep.subr.bf16.mxu0 0
    %808 = vmatpush2.bf16.msra.mxu0 0
    %809 = vmatprep.subr.bf16.mxu0 0
    %810 = vmatpush2.bf16.msra.mxu0 0
    %811 = vmatprep.subr.bf16.mxu0 0
    %812 = vmatpush2.bf16.msra.mxu0 0
    %813 = vmatprep.subr.bf16.mxu0 0
    %814 = vmatpush2.bf16.msra.mxu0 0
    %815 = vmatprep.mubr.bf16.mxu0 0
    %816 = vmatmul.mubr.bf16.gmra.mxu0 %v778
    %v817 = vpop.f32.mrf.mxu0
    %v818 = vadd.f32 %v764, %v817
    %v819 = vpop.f32.mrf.mxu0
    %v820 = vpop.f32.mrf.mxu0
    %v821 = vadd.f32 %v764, %v820
    %v822 = vpop.f32.mrf.mxu0
    %823 = vmatprep.mubr.bf16.mxu0 0
    %824 = vmatmul.mubr.bf16.gmra.mxu0 %v781
    %v825 = vpop.f32.mrf.mxu0
    %v826 = vadd.f32 %v764, %v825
    %v827 = vpop.f32.mrf.mxu0
    %v828 = vpop.f32.mrf.mxu0
    %v829 = vadd.f32 %v764, %v828
    %v830 = vpop.f32.mrf.mxu0
    %831 = vdwg.mxu0
    %v832 = vmax.f32 %v818, 0.0
    %v833 = vmax.f32 %v821, 0.0
    %v834 = vmax.f32 %v826, 0.0
    %v835 = vmax.f32 %v829, 0.0
    %v836 = vpack.c.bf16 %v833, %v832
    %v837 = vpack.c.bf16 %v835, %v834
    %v838 = vld [vmem:[#allocation4 + $0x47] sm:$0x1]
    %v839 = vlaneseq
    %v840 = vshrl.u32 %v839, 7
    %v841 = vsub.s32 0, %v840
    %v842 = vrot.slane %v838, %v841
    %v851 = vunpack.c.l.b16 %v149
    %v852 = vunpack.c.l.b16 %v150
    %v853 = vunpack.c.l.b16 %v151
    %v854 = vunpack.c.l.b16 %v152
    %v855 = vunpack.c.l.b16 %v153
    %v856 = vunpack.c.l.b16 %v154
    %v857 = vunpack.c.l.b16 %v155
    %v858 = vunpack.c.l.b16 %v156
    %v859 = vpack.c.b16 %v852, %v851
    %v860 = vpack.c.b16 %v854, %v853
    %v861 = vpack.c.b16 %v856, %v855
    %v862 = vpack.c.b16 %v858, %v857
    %vm867 = vcmask 523264
    %v869 = vsel %vm867, %v836, 0
    %v872 = vsel %vm867, %v837, 0
    %874 = vmatprep.subr.bf16.mxu0 0
    %875 = vmatpush1.bf16.msra.mxu0 0
    %876 = vmatprep.subr.bf16.mxu0 0
    %877 = vmatpush1.bf16.msra.mxu0 0
    %878 = vmatprep.subr.bf16.mxu0 0
    %879 = vmatpush1.bf16.msra.mxu0 0
    %880 = vmatprep.subr.bf16.mxu0 0
    %881 = vmatpush1.bf16.msra.mxu0 0
    %882 = vmatprep.subr.bf16.mxu0 0
    %883 = vmatpush1.bf16.msra.mxu0 %v862
    %884 = vmatprep.subr.bf16.mxu0 0
    %885 = vmatpush1.bf16.msra.mxu0 %v861
    %886 = vmatprep.subr.bf16.mxu0 0
    %887 = vmatpush1.bf16.msra.mxu0 %v860
    %888 = vmatprep.subr.bf16.mxu0 0
    %889 = vmatpush1.bf16.msra.mxu0 %v859
    %890 = vmatprep.subr.bf16.mxu0 0
    %891 = vmatpush2.bf16.msra.mxu0 0
    %892 = vmatprep.subr.bf16.mxu0 0
    %893 = vmatpush2.bf16.msra.mxu0 0
    %894 = vmatprep.subr.bf16.mxu0 0
    %895 = vmatpush2.bf16.msra.mxu0 0
    %896 = vmatprep.subr.bf16.mxu0 0
    %897 = vmatpush2.bf16.msra.mxu0 0
    %898 = vmatprep.subr.bf16.mxu0 0
    %899 = vmatpush2.bf16.msra.mxu0 0
    %900 = vmatprep.subr.bf16.mxu0 0
    %901 = vmatpush2.bf16.msra.mxu0 0
    %902 = vmatprep.subr.bf16.mxu0 0
    %903 = vmatpush2.bf16.msra.mxu0 0
    %904 = vmatprep.subr.bf16.mxu0 0
    %905 = vmatpush2.bf16.msra.mxu0 0
    %906 = vmatprep.mubr.bf16.mxu0 0
    %907 = vmatmul.mubr.bf16.gmra.mxu0 %v869
    %v908 = vpop.f32.mrf.mxu0
    %v909 = vadd.f32 %v842, %v908
    %v910 = vpop.f32.mrf.mxu0
    %v911 = vpop.f32.mrf.mxu0
    %v912 = vadd.f32 %v842, %v911
    %v913 = vpop.f32.mrf.mxu0
    %914 = vmatprep.mubr.bf16.mxu0 0
    %915 = vmatmul.mubr.bf16.gmra.mxu0 %v872
    %v916 = vpop.f32.mrf.mxu0
    %v917 = vadd.f32 %v842, %v916
    %v918 = vpop.f32.mrf.mxu0
    %v919 = vpop.f32.mrf.mxu0
    %v920 = vadd.f32 %v842, %v919
    %v921 = vpop.f32.mrf.mxu0
    %922 = vdwg.mxu0
    %v923 = vadd.f32 %v754, %v909
    %v924 = vadd.f32 %v755, %v912
    %v925 = vadd.f32 %v756, %v917
    %v926 = vadd.f32 %v757, %v920
    %v927 = vld [vmem:[#allocation4 + $0x44] sm:$0x1]
    %v928 = vld [vmem:[#allocation4 + $0x45] sm:$0x1]
    %v929 = vsel %vm176, %v923, 0.0
    %930 = vadd.xlane.f32.xlu0 %v929
    %v931 = vpop.xlane.xlu0 %930
    %v932 = vsel %vm176, %v924, 0.0
    %933 = vadd.xlane.f32.xlu0 %v932
    %v934 = vpop.xlane.xlu0 %933
    %v935 = vsel %vm176, %v925, 0.0
    %936 = vadd.xlane.f32.xlu0 %v935
    %v937 = vpop.xlane.xlu0 %936
    %v938 = vsel %vm176, %v926, 0.0
    %939 = vadd.xlane.f32.xlu0 %v938
    %v940 = vpop.xlane.xlu0 %939
    %v941 = vmul.f32 %v931, %v701
    %v942 = vmul.f32 %v934, %v701
    %v943 = vmul.f32 %v937, %v701
    %v944 = vmul.f32 %v940, %v701
    %v945 = vsub.f32 %v923, %v941
    %v946 = vsub.f32 %v924, %v942
    %v947 = vsub.f32 %v925, %v943
    %v948 = vsub.f32 %v926, %v944
    %v949 = vmul.f32 %v945, %v945
    %v950 = vmul.f32 %v946, %v946
    %v951 = vmul.f32 %v947, %v947
    %v952 = vmul.f32 %v948, %v948
    %v953 = vsel %vm176, %v949, 0.0
    %954 = vadd.xlane.f32.xlu0 %v953
    %v955 = vpop.xlane.xlu0 %954
    %v956 = vsel %vm176, %v950, 0.0
    %957 = vadd.xlane.f32.xlu0 %v956
    %v958 = vpop.xlane.xlu0 %957
    %v959 = vsel %vm176, %v951, 0.0
    %960 = vadd.xlane.f32.xlu0 %v959
    %v961 = vpop.xlane.xlu0 %960
    %v962 = vsel %vm176, %v952, 0.0
    %963 = vadd.xlane.f32.xlu0 %v962
    %v964 = vpop.xlane.xlu0 %963
    %v965 = vmul.f32 %v955, %v701
    %v966 = vmul.f32 %v958, %v701
    %v967 = vmul.f32 %v961, %v701
    %v968 = vmul.f32 %v964, %v701
    %v969 = vadd.f32 %v965, 1e-05
    %v970 = vadd.f32 %v966, 1e-05
    %v971 = vadd.f32 %v967, 1e-05
    %v972 = vadd.f32 %v968, 1e-05
    %v973 = vrsqrt.pop %v969
    %v974 = vrsqrt.pop %v970
    %v975 = vrsqrt.pop %v971
    %v976 = vrsqrt.pop %v972
    %v977 = vmul.f32 %v945, %v973
    %v978 = vmul.f32 %v946, %v974
    %v979 = vmul.f32 %v947, %v975
    %v980 = vmul.f32 %v948, %v976
    %v981 = vlaneseq
    %v982 = vshrl.u32 %v981, 7
    %v983 = vsub.s32 0, %v982
    %v984 = vrot.slane %v927, %v983
    %v985 = vmul.f32 %v977, %v984
    %v986 = vmul.f32 %v978, %v984
    %v987 = vmul.f32 %v979, %v984
    %v988 = vmul.f32 %v980, %v984
    %v989 = vlaneseq
    %v990 = vshrl.u32 %v989, 7
    %v991 = vsub.s32 0, %v990
    %v992 = vrot.slane %v928, %v991
    %v993 = vadd.f32 %v985, %v992
    %v994 = vadd.f32 %v986, %v992
    %v995 = vadd.f32 %v987, %v992
    %v996 = vadd.f32 %v988, %v992
    %v997 = vld [vmem:[#allocation2 + $0x50] sm:$0xf]
    %v998 = vld [vmem:[#allocation2 + $0x54] sm:$0xf]
    %v999 = vld [vmem:[#allocation2 + $0x58] sm:$0xf]
    %v1000 = vld [vmem:[#allocation2 + $0x5c] sm:$0xf]
    %v1001 = vld [vmem:[#allocation2 + $0x60] sm:$0xf]
    %v1002 = vld [vmem:[#allocation2 + $0x64] sm:$0xf]
    %v1003 = vld [vmem:[#allocation2 + $0x68] sm:$0xf]
    %v1004 = vld [vmem:[#allocation2 + $0x6c] sm:$0xf]
    %v1005 = vld [vmem:[#allocation2 + $0x70] sm:$0xf]
    %v1006 = vld [vmem:[#allocation2 + $0x74] sm:$0xf]
    %v1007 = vld [vmem:[#allocation2 + $0x78] sm:$0xf]
    %v1008 = vld [vmem:[#allocation2 + $0x7c] sm:$0xf]
    %v1009 = vld [vmem:[#allocation2 + $0x80] sm:$0xf]
    %v1010 = vld [vmem:[#allocation2 + $0x84] sm:$0xf]
    %v1011 = vld [vmem:[#allocation2 + $0x88] sm:$0xf]
    %v1012 = vld [vmem:[#allocation2 + $0x8c] sm:$0xf]
    %v1013 = vld [vmem:[#allocation2 + $0x90] sm:$0xf]
    %v1014 = vld [vmem:[#allocation2 + $0x94] sm:$0xf]
    %v1015 = vld [vmem:[#allocation2 + $0x98] sm:$0xf]
    %v1016 = vld [vmem:[#allocation2 + $0x9c] sm:$0xf]
    %v1017 = vpack.c.bf16 %v994, %v993
    %v1018 = vpack.c.bf16 %v996, %v995
    %v1019 = vld [vmem:[#allocation4 + $0x48] sm:$0x1]
    %v1020 = vlaneseq
    %v1021 = vshrl.u32 %v1020, 7
    %v1022 = vsub.s32 0, %v1021
    %v1023 = vrot.slane %v1019, %v1022
    %v1028 = vunpack.c.l.b16 %v997
    %v1029 = vunpack.c.l.b16 %v998
    %v1030 = vunpack.c.l.b16 %v999
    %v1031 = vunpack.c.l.b16 %v1000
    %v1032 = vpack.c.b16 %v1029, %v1028
    %v1033 = vpack.c.b16 %v1031, %v1030
    %v1037 = vsel %vm176, %v1017, 0
    %v1040 = vsel %vm176, %v1018, 0
    %1042 = vmatprep.subr.bf16.mxu0 0
    %1043 = vmatpush1.bf16.msra.mxu0 0
    %1044 = vmatprep.subr.bf16.mxu0 0
    %1045 = vmatpush1.bf16.msra.mxu0 0
    %1046 = vmatprep.subr.bf16.mxu0 0
    %1047 = vmatpush1.bf16.msra.mxu0 0
    %1048 = vmatprep.subr.bf16.mxu0 0
    %1049 = vmatpush1.bf16.msra.mxu0 0
    %1050 = vmatprep.subr.bf16.mxu0 0
    %1051 = vmatpush1.bf16.msra.mxu0 0
    %1052 = vmatprep.subr.bf16.mxu0 0
    %1053 = vmatpush1.bf16.msra.mxu0 0
    %1054 = vmatprep.subr.bf16.mxu0 0
    %1055 = vmatpush1.bf16.msra.mxu0 %v1033
    %1056 = vmatprep.subr.bf16.mxu0 0
    %1057 = vmatpush1.bf16.msra.mxu0 %v1032
    %1058 = vmatprep.subr.bf16.mxu0 0
    %1059 = vmatpush2.bf16.msra.mxu0 0
    %1060 = vmatprep.subr.bf16.mxu0 0
    %1061 = vmatpush2.bf16.msra.mxu0 0
    %1062 = vmatprep.subr.bf16.mxu0 0
    %1063 = vmatpush2.bf16.msra.mxu0 0
    %1064 = vmatprep.subr.bf16.mxu0 0
    %1065 = vmatpush2.bf16.msra.mxu0 0
    %1066 = vmatprep.subr.bf16.mxu0 0
    %1067 = vmatpush2.bf16.msra.mxu0 0
    %1068 = vmatprep.subr.bf16.mxu0 0
    %1069 = vmatpush2.bf16.msra.mxu0 0
    %1070 = vmatprep.subr.bf16.mxu0 0
    %1071 = vmatpush2.bf16.msra.mxu0 0
    %1072 = vmatprep.subr.bf16.mxu0 0
    %1073 = vmatpush2.bf16.msra.mxu0 0
    %1074 = vmatprep.mubr.bf16.mxu0 0
    %1075 = vmatmul.mubr.bf16.gmra.mxu0 %v1037
    %v1076 = vpop.f32.mrf.mxu0
    %v1077 = vadd.f32 %v1023, %v1076
    %v1078 = vpop.f32.mrf.mxu0
    %v1079 = vpop.f32.mrf.mxu0
    %v1080 = vadd.f32 %v1023, %v1079
    %v1081 = vpop.f32.mrf.mxu0
    %1082 = vmatprep.mubr.bf16.mxu0 0
    %1083 = vmatmul.mubr.bf16.gmra.mxu0 %v1040
    %v1084 = vpop.f32.mrf.mxu0
    %v1085 = vadd.f32 %v1023, %v1084
    %v1086 = vpop.f32.mrf.mxu0
    %v1087 = vpop.f32.mrf.mxu0
    %v1088 = vadd.f32 %v1023, %v1087
    %v1089 = vpop.f32.mrf.mxu0
    %1090 = vdwg.mxu0
    %v1091 = vpack.c.bf16 %v1080, %v1077
    %v1092 = vpack.c.bf16 %v1088, %v1085
    %v1093 = vmul.bf16 %v1091, %v275
    %v1094 = vmul.bf16 %v1092, %v277
    %v1095 = vmul.bf16 %v1091, %v279
    %v1096 = vmul.bf16 %v1092, %v281
    %v1097 = vmul.bf16 %v1091, %v283
    %v1098 = vmul.bf16 %v1092, %v285
    %v1099 = vmul.bf16 %v1091, %v287
    %v1100 = vmul.bf16 %v1092, %v289
    %v1101 = vmul.bf16 %v1091, %v307
    %v1102 = vmul.bf16 %v1092, %v309
    %v1103 = vmul.bf16 %v1091, %v311
    %v1104 = vmul.bf16 %v1092, %v313
    %v1105 = vmul.bf16 %v1091, %v315
    %v1106 = vmul.bf16 %v1092, %v317
    %v1107 = vmul.bf16 %v1091, %v319
    %v1108 = vmul.bf16 %v1092, %v321
    %1117 = vrot.lane.b32.xlu0 %v1093, 96
    %v1118 = vpop.permute.xlu0 %1117
    %1119 = vrot.lane.b32.xlu0 %v1094, 96
    %v1120 = vpop.permute.xlu0 %1119
    %1121 = vrot.lane.b32.xlu0 %v1095, 96
    %v1122 = vpop.permute.xlu0 %1121
    %1123 = vrot.lane.b32.xlu0 %v1096, 96
    %v1124 = vpop.permute.xlu0 %1123
    %1125 = vrot.lane.b32.xlu0 %v1097, 96
    %v1126 = vpop.permute.xlu0 %1125
    %1127 = vrot.lane.b32.xlu0 %v1098, 96
    %v1128 = vpop.permute.xlu0 %1127
    %1129 = vrot.lane.b32.xlu0 %v1099, 96
    %v1130 = vpop.permute.xlu0 %1129
    %1131 = vrot.lane.b32.xlu0 %v1100, 96
    %v1132 = vpop.permute.xlu0 %1131
    %v1134 = vsel %vm176, %v1091, 0
    %v1137 = vsel %vm176, %v1092, 0
    %v1140 = vsel %vm176, %v1118, 0
    %v1143 = vsel %vm176, %v1120, 0
    %v1146 = vsel %vm176, %v1122, 0
    %v1149 = vsel %vm176, %v1124, 0
    %v1152 = vsel %vm176, %v1126, 0
    %v1155 = vsel %vm176, %v1128, 0
    %v1158 = vsel %vm176, %v1130, 0
    %v1161 = vsel %vm176, %v1132, 0
    %1163 = vmatprep.subr.bf16.mxu0 0
    %1164 = vmatpush1.bf16.xpose.msra.mxu0 %v1161
    %1165 = vmatprep.subr.bf16.mxu0 0
    %1166 = vmatpush1.bf16.xpose.msra.mxu0 %v1158
    %1167 = vmatprep.subr.bf16.mxu0 0
    %1168 = vmatpush1.bf16.xpose.msra.mxu0 %v1155
    %1169 = vmatprep.subr.bf16.mxu0 0
    %1170 = vmatpush1.bf16.xpose.msra.mxu0 %v1152
    %1171 = vmatprep.subr.bf16.mxu0 0
    %1172 = vmatpush1.bf16.xpose.msra.mxu0 %v1149
    %1173 = vmatprep.subr.bf16.mxu0 0
    %1174 = vmatpush1.bf16.xpose.msra.mxu0 %v1146
    %1175 = vmatprep.subr.bf16.mxu0 0
    %1176 = vmatpush1.bf16.xpose.msra.mxu0 %v1143
    %1177 = vmatprep.subr.bf16.mxu0 0
    %1178 = vmatpush1.bf16.xpose.msra.mxu0 %v1140
    %1179 = vmatprep.subr.bf16.mxu0 0
    %1180 = vmatpush2.bf16.xpose.msra.mxu0 0
    %1181 = vmatprep.subr.bf16.mxu0 0
    %1182 = vmatpush2.bf16.xpose.msra.mxu0 0
    %1183 = vmatprep.subr.bf16.mxu0 0
    %1184 = vmatpush2.bf16.xpose.msra.mxu0 0
    %1185 = vmatprep.subr.bf16.mxu0 0
    %1186 = vmatpush2.bf16.xpose.msra.mxu0 0
    %1187 = vmatprep.subr.bf16.mxu0 0
    %1188 = vmatpush2.bf16.xpose.msra.mxu0 0
    %1189 = vmatprep.subr.bf16.mxu0 0
    %1190 = vmatpush2.bf16.xpose.msra.mxu0 0
    %1191 = vmatprep.subr.bf16.mxu0 0
    %1192 = vmatpush2.bf16.xpose.msra.mxu0 0
    %1193 = vmatprep.subr.bf16.mxu0 0
    %1194 = vmatpush2.bf16.xpose.msra.mxu0 0
    %1195 = vmatprep.mubr.bf16.mxu0 0
    %1196 = vmatmul.mubr.bf16.gmra.mxu0 %v1134
    %v1197 = vpop.f32.mrf.mxu0
    %v1198 = vadd.f32 %v43, %v1197
    %v1199 = vpop.f32.mrf.mxu0
    %v1200 = vpop.f32.mrf.mxu0
    %v1201 = vadd.f32 %v44, %v1200
    %v1202 = vpop.f32.mrf.mxu0
    %1203 = vmatprep.mubr.bf16.mxu0 0
    %1204 = vmatmul.mubr.bf16.gmra.mxu0 %v1137
    %v1205 = vpop.f32.mrf.mxu0
    %v1206 = vadd.f32 %v45, %v1205
    %v1207 = vpop.f32.mrf.mxu0
    %v1208 = vpop.f32.mrf.mxu0
    %v1209 = vadd.f32 %v46, %v1208
    %v1210 = vpop.f32.mrf.mxu0
    %1211 = vdwg.mxu0
    %1212 = vmax.xlane.f32.xlu0 %v1198
    %v1213 = vpop.xlane.xlu0 %1212
    %1214 = vmax.xlane.f32.xlu0 %v1201
    %v1215 = vpop.xlane.xlu0 %1214
    %1216 = vmax.xlane.f32.xlu0 %v1206
    %v1217 = vpop.xlane.xlu0 %1216
    %1218 = vmax.xlane.f32.xlu0 %v1209
    %v1219 = vpop.xlane.xlu0 %1218
    %v1220 = vsub.f32 %v1198, %v1213
    %v1221 = vsub.f32 %v1201, %v1215
    %v1222 = vsub.f32 %v1206, %v1217
    %v1223 = vsub.f32 %v1209, %v1219
    %v1224 = vmul.f32 %v1220, 1.442695
    %v1225 = vpow.pop %v1224
    %v1226 = vmul.f32 %v1221, 1.442695
    %v1227 = vpow.pop %v1226
    %v1228 = vmul.f32 %v1222, 1.442695
    %v1229 = vpow.pop %v1228
    %v1230 = vmul.f32 %v1223, 1.442695
    %v1231 = vpow.pop %v1230
    %v1232 = vpack.c.bf16 %v1227, %v1225
    %v1233 = vpack.c.bf16 %v1231, %v1229
    %1242 = vrot.lane.b32.xlu0 %v1101, 64
    %v1243 = vpop.permute.xlu0 %1242
    %1244 = vrot.lane.b32.xlu0 %v1102, 64
    %v1245 = vpop.permute.xlu0 %1244
    %1246 = vrot.lane.b32.xlu0 %v1103, 64
    %v1247 = vpop.permute.xlu0 %1246
    %1248 = vrot.lane.b32.xlu0 %v1104, 64
    %v1249 = vpop.permute.xlu0 %1248
    %1250 = vrot.lane.b32.xlu0 %v1105, 64
    %v1251 = vpop.permute.xlu0 %1250
    %1252 = vrot.lane.b32.xlu0 %v1106, 64
    %v1253 = vpop.permute.xlu0 %1252
    %1254 = vrot.lane.b32.xlu0 %v1107, 64
    %v1255 = vpop.permute.xlu0 %1254
    %1256 = vrot.lane.b32.xlu0 %v1108, 64
    %v1257 = vpop.permute.xlu0 %1256
    %1266 = vmatprep.subr.bf16.mxu0 0
    %1267 = vmatpush1.bf16.msra.mxu0 %v1257
    %1268 = vmatprep.subr.bf16.mxu0 0
    %1269 = vmatpush1.bf16.msra.mxu0 %v1255
    %1270 = vmatprep.subr.bf16.mxu0 0
    %1271 = vmatpush1.bf16.msra.mxu0 %v1253
    %1272 = vmatprep.subr.bf16.mxu0 0
    %1273 = vmatpush1.bf16.msra.mxu0 %v1251
    %1274 = vmatprep.subr.bf16.mxu0 0
    %1275 = vmatpush1.bf16.msra.mxu0 %v1249
    %1276 = vmatprep.subr.bf16.mxu0 0
    %1277 = vmatpush1.bf16.msra.mxu0 %v1247
    %1278 = vmatprep.subr.bf16.mxu0 0
    %1279 = vmatpush1.bf16.msra.mxu0 %v1245
    %1280 = vmatprep.subr.bf16.mxu0 0
    %1281 = vmatpush1.bf16.msra.mxu0 %v1243
    %1282 = vmatprep.subr.bf16.mxu0 0
    %1283 = vmatpush2.bf16.msra.mxu0 0
    %1284 = vmatprep.subr.bf16.mxu0 0
    %1285 = vmatpush2.bf16.msra.mxu0 0
    %1286 = vmatprep.subr.bf16.mxu0 0
    %1287 = vmatpush2.bf16.msra.mxu0 0
    %1288 = vmatprep.subr.bf16.mxu0 0
    %1289 = vmatpush2.bf16.msra.mxu0 0
    %1290 = vmatprep.subr.bf16.mxu0 0
    %1291 = vmatpush2.bf16.msra.mxu0 0
    %1292 = vmatprep.subr.bf16.mxu0 0
    %1293 = vmatpush2.bf16.msra.mxu0 0
    %1294 = vmatprep.subr.bf16.mxu0 0
    %1295 = vmatpush2.bf16.msra.mxu0 0
    %1296 = vmatprep.subr.bf16.mxu0 0
    %1297 = vmatpush2.bf16.msra.mxu0 0
    %1298 = vmatprep.mubr.bf16.mxu0 0
    %1299 = vmatmul.mubr.bf16.gmra.mxu0 %v1232
    %v1300 = vpop.f32.mrf.mxu0
    %v1301 = vadd.f32 0.0, %v1300
    %v1302 = vpop.f32.mrf.mxu0
    %v1303 = vpop.f32.mrf.mxu0
    %v1304 = vadd.f32 0.0, %v1303
    %v1305 = vpop.f32.mrf.mxu0
    %1306 = vmatprep.mubr.bf16.mxu0 0
    %1307 = vmatmul.mubr.bf16.gmra.mxu0 %v1233
    %v1308 = vpop.f32.mrf.mxu0
    %v1309 = vadd.f32 0.0, %v1308
    %v1310 = vpop.f32.mrf.mxu0
    %v1311 = vpop.f32.mrf.mxu0
    %v1312 = vadd.f32 0.0, %v1311
    %v1313 = vpop.f32.mrf.mxu0
    %1314 = vdwg.mxu0
    %1315 = vmatprep.subr.bf16.mxu0 0
    %1316 = vmatpush1.bf16.msra.mxu0 %v273
    %1317 = vmatprep.subr.bf16.mxu0 0
    %1318 = vmatpush1.bf16.msra.mxu0 %v272
    %1319 = vmatprep.subr.bf16.mxu0 0
    %1320 = vmatpush1.bf16.msra.mxu0 %v271
    %1321 = vmatprep.subr.bf16.mxu0 0
    %1322 = vmatpush1.bf16.msra.mxu0 %v270
    %1323 = vmatprep.subr.bf16.mxu0 0
    %1324 = vmatpush1.bf16.msra.mxu0 %v269
    %1325 = vmatprep.subr.bf16.mxu0 0
    %1326 = vmatpush1.bf16.msra.mxu0 %v268
    %1327 = vmatprep.subr.bf16.mxu0 0
    %1328 = vmatpush1.bf16.msra.mxu0 %v267
    %1329 = vmatprep.subr.bf16.mxu0 0
    %1330 = vmatpush1.bf16.msra.mxu0 %v266
    %1331 = vmatprep.subr.bf16.mxu0 0
    %1332 = vmatpush2.bf16.msra.mxu0 0
    %1333 = vmatprep.subr.bf16.mxu0 0
    %1334 = vmatpush2.bf16.msra.mxu0 0
    %1335 = vmatprep.subr.bf16.mxu0 0
    %1336 = vmatpush2.bf16.msra.mxu0 0
    %1337 = vmatprep.subr.bf16.mxu0 0
    %1338 = vmatpush2.bf16.msra.mxu0 0
    %1339 = vmatprep.subr.bf16.mxu0 0
    %1340 = vmatpush2.bf16.msra.mxu0 0
    %1341 = vmatprep.subr.bf16.mxu0 0
    %1342 = vmatpush2.bf16.msra.mxu0 0
    %1343 = vmatprep.subr.bf16.mxu0 0
    %1344 = vmatpush2.bf16.msra.mxu0 0
    %1345 = vmatprep.subr.bf16.mxu0 0
    %1346 = vmatpush2.bf16.msra.mxu0 0
    %1347 = vmatprep.mubr.bf16.mxu0 0
    %1348 = vmatmul.mubr.bf16.gmra.mxu0 %v1232
    %v1349 = vpop.f32.mrf.mxu0
    %v1350 = vadd.f32 0.0, %v1349
    %v1351 = vpop.f32.mrf.mxu0
    %v1352 = vpop.f32.mrf.mxu0
    %v1353 = vadd.f32 0.0, %v1352
    %v1354 = vpop.f32.mrf.mxu0
    %1355 = vmatprep.mubr.bf16.mxu0 0
    %1356 = vmatmul.mubr.bf16.gmra.mxu0 %v1233
    %v1357 = vpop.f32.mrf.mxu0
    %v1358 = vadd.f32 0.0, %v1357
    %v1359 = vpop.f32.mrf.mxu0
    %v1360 = vpop.f32.mrf.mxu0
    %v1361 = vadd.f32 0.0, %v1360
    %v1362 = vpop.f32.mrf.mxu0
    %1363 = vdwg.mxu0
    %v1364 = vrcp.pop %v1350
    %v1365 = vrcp.pop %v1353
    %v1366 = vrcp.pop %v1358
    %v1367 = vrcp.pop %v1361
    %v1368 = vmul.f32 %v1301, %v1364
    %v1369 = vmul.f32 %v1304, %v1365
    %v1370 = vmul.f32 %v1309, %v1366
    %v1371 = vmul.f32 %v1312, %v1367
    %v1372 = vpack.c.bf16 %v1369, %v1368
    %v1373 = vpack.c.bf16 %v1371, %v1370
    %v1374 = vld [vmem:[#allocation4 + $0x49] sm:$0x1]
    %v1375 = vlaneseq
    %v1376 = vshrl.u32 %v1375, 7
    %v1377 = vsub.s32 0, %v1376
    %v1378 = vrot.slane %v1374, %v1377
    %v1383 = vunpack.c.l.b16 %v1001
    %v1384 = vunpack.c.l.b16 %v1002
    %v1385 = vunpack.c.l.b16 %v1003
    %v1386 = vunpack.c.l.b16 %v1004
    %v1387 = vpack.c.b16 %v1384, %v1383
    %v1388 = vpack.c.b16 %v1386, %v1385
    %v1392 = vsel %vm176, %v1372, 0
    %v1395 = vsel %vm176, %v1373, 0
    %1397 = vmatprep.subr.bf16.mxu0 0
    %1398 = vmatpush1.bf16.msra.mxu0 0
    %1399 = vmatprep.subr.bf16.mxu0 0
    %1400 = vmatpush1.bf16.msra.mxu0 0
    %1401 = vmatprep.subr.bf16.mxu0 0
    %1402 = vmatpush1.bf16.msra.mxu0 0
    %1403 = vmatprep.subr.bf16.mxu0 0
    %1404 = vmatpush1.bf16.msra.mxu0 0
    %1405 = vmatprep.subr.bf16.mxu0 0
    %1406 = vmatpush1.bf16.msra.mxu0 0
    %1407 = vmatprep.subr.bf16.mxu0 0
    %1408 = vmatpush1.bf16.msra.mxu0 0
    %1409 = vmatprep.subr.bf16.mxu0 0
    %1410 = vmatpush1.bf16.msra.mxu0 %v1388
    %1411 = vmatprep.subr.bf16.mxu0 0
    %1412 = vmatpush1.bf16.msra.mxu0 %v1387
    %1413 = vmatprep.subr.bf16.mxu0 0
    %1414 = vmatpush2.bf16.msra.mxu0 0
    %1415 = vmatprep.subr.bf16.mxu0 0
    %1416 = vmatpush2.bf16.msra.mxu0 0
    %1417 = vmatprep.subr.bf16.mxu0 0
    %1418 = vmatpush2.bf16.msra.mxu0 0
    %1419 = vmatprep.subr.bf16.mxu0 0
    %1420 = vmatpush2.bf16.msra.mxu0 0
    %1421 = vmatprep.subr.bf16.mxu0 0
    %1422 = vmatpush2.bf16.msra.mxu0 0
    %1423 = vmatprep.subr.bf16.mxu0 0
    %1424 = vmatpush2.bf16.msra.mxu0 0
    %1425 = vmatprep.subr.bf16.mxu0 0
    %1426 = vmatpush2.bf16.msra.mxu0 0
    %1427 = vmatprep.subr.bf16.mxu0 0
    %1428 = vmatpush2.bf16.msra.mxu0 0
    %1429 = vmatprep.mubr.bf16.mxu0 0
    %1430 = vmatmul.mubr.bf16.gmra.mxu0 %v1392
    %v1431 = vpop.f32.mrf.mxu0
    %v1432 = vadd.f32 %v1378, %v1431
    %v1433 = vpop.f32.mrf.mxu0
    %v1434 = vpop.f32.mrf.mxu0
    %v1435 = vadd.f32 %v1378, %v1434
    %v1436 = vpop.f32.mrf.mxu0
    %1437 = vmatprep.mubr.bf16.mxu0 0
    %1438 = vmatmul.mubr.bf16.gmra.mxu0 %v1395
    %v1439 = vpop.f32.mrf.mxu0
    %v1440 = vadd.f32 %v1378, %v1439
    %v1441 = vpop.f32.mrf.mxu0
    %v1442 = vpop.f32.mrf.mxu0
    %v1443 = vadd.f32 %v1378, %v1442
    %v1444 = vpop.f32.mrf.mxu0
    %1445 = vdwg.mxu0
    %v1446 = vadd.f32 %v993, %v1432
    %v1447 = vadd.f32 %v994, %v1435
    %v1448 = vadd.f32 %v995, %v1440
    %v1449 = vadd.f32 %v996, %v1443
    %v1450 = vld [vmem:[#allocation4 + $0x4a] sm:$0x1]
    %v1451 = vld [vmem:[#allocation4 + $0x4b] sm:$0x1]
    %v1452 = vsel %vm176, %v1446, 0.0
    %1453 = vadd.xlane.f32.xlu0 %v1452
    %v1454 = vpop.xlane.xlu0 %1453
    %v1455 = vsel %vm176, %v1447, 0.0
    %1456 = vadd.xlane.f32.xlu0 %v1455
    %v1457 = vpop.xlane.xlu0 %1456
    %v1458 = vsel %vm176, %v1448, 0.0
    %1459 = vadd.xlane.f32.xlu0 %v1458
    %v1460 = vpop.xlane.xlu0 %1459
    %v1461 = vsel %vm176, %v1449, 0.0
    %1462 = vadd.xlane.f32.xlu0 %v1461
    %v1463 = vpop.xlane.xlu0 %1462
    %v1464 = vmul.f32 %v1454, %v701
    %v1465 = vmul.f32 %v1457, %v701
    %v1466 = vmul.f32 %v1460, %v701
    %v1467 = vmul.f32 %v1463, %v701
    %v1468 = vsub.f32 %v1446, %v1464
    %v1469 = vsub.f32 %v1447, %v1465
    %v1470 = vsub.f32 %v1448, %v1466
    %v1471 = vsub.f32 %v1449, %v1467
    %v1472 = vmul.f32 %v1468, %v1468
    %v1473 = vmul.f32 %v1469, %v1469
    %v1474 = vmul.f32 %v1470, %v1470
    %v1475 = vmul.f32 %v1471, %v1471
    %v1476 = vsel %vm176, %v1472, 0.0
    %1477 = vadd.xlane.f32.xlu0 %v1476
    %v1478 = vpop.xlane.xlu0 %1477
    %v1479 = vsel %vm176, %v1473, 0.0
    %1480 = vadd.xlane.f32.xlu0 %v1479
    %v1481 = vpop.xlane.xlu0 %1480
    %v1482 = vsel %vm176, %v1474, 0.0
    %1483 = vadd.xlane.f32.xlu0 %v1482
    %v1484 = vpop.xlane.xlu0 %1483
    %v1485 = vsel %vm176, %v1475, 0.0
    %1486 = vadd.xlane.f32.xlu0 %v1485
    %v1487 = vpop.xlane.xlu0 %1486
    %v1488 = vmul.f32 %v1478, %v701
    %v1489 = vmul.f32 %v1481, %v701
    %v1490 = vmul.f32 %v1484, %v701
    %v1491 = vmul.f32 %v1487, %v701
    %v1492 = vadd.f32 %v1488, 1e-05
    %v1493 = vadd.f32 %v1489, 1e-05
    %v1494 = vadd.f32 %v1490, 1e-05
    %v1495 = vadd.f32 %v1491, 1e-05
    %v1496 = vrsqrt.pop %v1492
    %v1497 = vrsqrt.pop %v1493
    %v1498 = vrsqrt.pop %v1494
    %v1499 = vrsqrt.pop %v1495
    %v1500 = vmul.f32 %v1468, %v1496
    %v1501 = vmul.f32 %v1469, %v1497
    %v1502 = vmul.f32 %v1470, %v1498
    %v1503 = vmul.f32 %v1471, %v1499
    %v1504 = vlaneseq
    %v1505 = vshrl.u32 %v1504, 7
    %v1506 = vsub.s32 0, %v1505
    %v1507 = vrot.slane %v1450, %v1506
    %v1508 = vmul.f32 %v1500, %v1507
    %v1509 = vmul.f32 %v1501, %v1507
    %v1510 = vmul.f32 %v1502, %v1507
    %v1511 = vmul.f32 %v1503, %v1507
    %v1512 = vlaneseq
    %v1513 = vshrl.u32 %v1512, 7
    %v1514 = vsub.s32 0, %v1513
    %v1515 = vrot.slane %v1451, %v1514
    %v1516 = vadd.f32 %v1508, %v1515
    %v1517 = vadd.f32 %v1509, %v1515
    %v1518 = vadd.f32 %v1510, %v1515
    %v1519 = vadd.f32 %v1511, %v1515
    %v1520 = vpack.c.bf16 %v1517, %v1516
    %v1521 = vpack.c.bf16 %v1519, %v1518
    %v1522 = vld [vmem:[#allocation4 + $0x4e] sm:$0x1]
    %v1523 = vlaneseq
    %v1524 = vshrl.u32 %v1523, 7
    %v1525 = vsub.s32 0, %v1524
    %v1526 = vrot.slane %v1522, %v1525
    %v1531 = vunpack.c.l.b16 %v1005
    %v1532 = vunpack.c.l.b16 %v1006
    %v1533 = vunpack.c.l.b16 %v1007
    %v1534 = vunpack.c.l.b16 %v1008
    %v1535 = vpack.c.b16 %v1532, %v1531
    %v1536 = vpack.c.b16 %v1534, %v1533
    %v1540 = vsel %vm176, %v1520, 0
    %v1543 = vsel %vm176, %v1521, 0
    %1545 = vmatprep.subr.bf16.mxu0 0
    %1546 = vmatpush1.bf16.msra.mxu0 0
    %1547 = vmatprep.subr.bf16.mxu0 0
    %1548 = vmatpush1.bf16.msra.mxu0 0
    %1549 = vmatprep.subr.bf16.mxu0 0
    %1550 = vmatpush1.bf16.msra.mxu0 0
    %1551 = vmatprep.subr.bf16.mxu0 0
    %1552 = vmatpush1.bf16.msra.mxu0 0
    %1553 = vmatprep.subr.bf16.mxu0 0
    %1554 = vmatpush1.bf16.msra.mxu0 0
    %1555 = vmatprep.subr.bf16.mxu0 0
    %1556 = vmatpush1.bf16.msra.mxu0 0
    %1557 = vmatprep.subr.bf16.mxu0 0
    %1558 = vmatpush1.bf16.msra.mxu0 %v1536
    %1559 = vmatprep.subr.bf16.mxu0 0
    %1560 = vmatpush1.bf16.msra.mxu0 %v1535
    %1561 = vmatprep.subr.bf16.mxu0 0
    %1562 = vmatpush2.bf16.msra.mxu0 0
    %1563 = vmatprep.subr.bf16.mxu0 0
    %1564 = vmatpush2.bf16.msra.mxu0 0
    %1565 = vmatprep.subr.bf16.mxu0 0
    %1566 = vmatpush2.bf16.msra.mxu0 0
    %1567 = vmatprep.subr.bf16.mxu0 0
    %1568 = vmatpush2.bf16.msra.mxu0 0
    %1569 = vmatprep.subr.bf16.mxu0 0
    %1570 = vmatpush2.bf16.msra.mxu0 0
    %1571 = vmatprep.subr.bf16.mxu0 0
    %1572 = vmatpush2.bf16.msra.mxu0 0
    %1573 = vmatprep.subr.bf16.mxu0 0
    %1574 = vmatpush2.bf16.msra.mxu0 0
    %1575 = vmatprep.subr.bf16.mxu0 0
    %1576 = vmatpush2.bf16.msra.mxu0 0
    %1577 = vmatprep.mubr.bf16.mxu0 0
    %1578 = vmatmul.mubr.bf16.gmra.mxu0 %v1540
    %v1579 = vpop.f32.mrf.mxu0
    %v1580 = vadd.f32 %v1526, %v1579
    %v1581 = vpop.f32.mrf.mxu0
    %v1582 = vpop.f32.mrf.mxu0
    %v1583 = vadd.f32 %v1526, %v1582
    %v1584 = vpop.f32.mrf.mxu0
    %1585 = vmatprep.mubr.bf16.mxu0 0
    %1586 = vmatmul.mubr.bf16.gmra.mxu0 %v1543
    %v1587 = vpop.f32.mrf.mxu0
    %v1588 = vadd.f32 %v1526, %v1587
    %v1589 = vpop.f32.mrf.mxu0
    %v1590 = vpop.f32.mrf.mxu0
    %v1591 = vadd.f32 %v1526, %v1590
    %v1592 = vpop.f32.mrf.mxu0
    %1593 = vdwg.mxu0
    %v1594 = vmax.f32 %v1580, 0.0
    %v1595 = vmax.f32 %v1583, 0.0
    %v1596 = vmax.f32 %v1588, 0.0
    %v1597 = vmax.f32 %v1591, 0.0
    %v1598 = vpack.c.bf16 %v1595, %v1594
    %v1599 = vpack.c.bf16 %v1597, %v1596
    %v1600 = vld [vmem:[#allocation4 + $0x4f] sm:$0x1]
    %v1601 = vlaneseq
    %v1602 = vshrl.u32 %v1601, 7
    %v1603 = vsub.s32 0, %v1602
    %v1604 = vrot.slane %v1600, %v1603
    %v1613 = vunpack.c.l.b16 %v1009
    %v1614 = vunpack.c.l.b16 %v1010
    %v1615 = vunpack.c.l.b16 %v1011
    %v1616 = vunpack.c.l.b16 %v1012
    %v1617 = vunpack.c.l.b16 %v1013
    %v1618 = vunpack.c.l.b16 %v1014
    %v1619 = vunpack.c.l.b16 %v1015
    %v1620 = vunpack.c.l.b16 %v1016
    %v1621 = vpack.c.b16 %v1614, %v1613
    %v1622 = vpack.c.b16 %v1616, %v1615
    %v1623 = vpack.c.b16 %v1618, %v1617
    %v1624 = vpack.c.b16 %v1620, %v1619
    %v1630 = vsel %vm867, %v1598, 0
    %v1633 = vsel %vm867, %v1599, 0
    %1635 = vmatprep.subr.bf16.mxu0 0
    %1636 = vmatpush1.bf16.msra.mxu0 0
    %1637 = vmatprep.subr.bf16.mxu0 0
    %1638 = vmatpush1.bf16.msra.mxu0 0
    %1639 = vmatprep.subr.bf16.mxu0 0
    %1640 = vmatpush1.bf16.msra.mxu0 0
    %1641 = vmatprep.subr.bf16.mxu0 0
    %1642 = vmatpush1.bf16.msra.mxu0 0
    %1643 = vmatprep.subr.bf16.mxu0 0
    %1644 = vmatpush1.bf16.msra.mxu0 %v1624
    %1645 = vmatprep.subr.bf16.mxu0 0
    %1646 = vmatpush1.bf16.msra.mxu0 %v1623
    %1647 = vmatprep.subr.bf16.mxu0 0
    %1648 = vmatpush1.bf16.msra.mxu0 %v1622
    %1649 = vmatprep.subr.bf16.mxu0 0
    %1650 = vmatpush1.bf16.msra.mxu0 %v1621
    %1651 = vmatprep.subr.bf16.mxu0 0
    %1652 = vmatpush2.bf16.msra.mxu0 0
    %1653 = vmatprep.subr.bf16.mxu0 0
    %1654 = vmatpush2.bf16.msra.mxu0 0
    %1655 = vmatprep.subr.bf16.mxu0 0
    %1656 = vmatpush2.bf16.msra.mxu0 0
    %1657 = vmatprep.subr.bf16.mxu0 0
    %1658 = vmatpush2.bf16.msra.mxu0 0
    %1659 = vmatprep.subr.bf16.mxu0 0
    %1660 = vmatpush2.bf16.msra.mxu0 0
    %1661 = vmatprep.subr.bf16.mxu0 0
    %1662 = vmatpush2.bf16.msra.mxu0 0
    %1663 = vmatprep.subr.bf16.mxu0 0
    %1664 = vmatpush2.bf16.msra.mxu0 0
    %1665 = vmatprep.subr.bf16.mxu0 0
    %1666 = vmatpush2.bf16.msra.mxu0 0
    %1667 = vmatprep.mubr.bf16.mxu0 0
    %1668 = vmatmul.mubr.bf16.gmra.mxu0 %v1630
    %v1669 = vpop.f32.mrf.mxu0
    %v1670 = vadd.f32 %v1604, %v1669
    %v1671 = vpop.f32.mrf.mxu0
    %v1672 = vpop.f32.mrf.mxu0
    %v1673 = vadd.f32 %v1604, %v1672
    %v1674 = vpop.f32.mrf.mxu0
    %1675 = vmatprep.mubr.bf16.mxu0 0
    %1676 = vmatmul.mubr.bf16.gmra.mxu0 %v1633
    %v1677 = vpop.f32.mrf.mxu0
    %v1678 = vadd.f32 %v1604, %v1677
    %v1679 = vpop.f32.mrf.mxu0
    %v1680 = vpop.f32.mrf.mxu0
    %v1681 = vadd.f32 %v1604, %v1680
    %v1682 = vpop.f32.mrf.mxu0
    %1683 = vdwg.mxu0
    %v1684 = vadd.f32 %v1516, %v1670
    %v1685 = vadd.f32 %v1517, %v1673
    %v1686 = vadd.f32 %v1518, %v1678
    %v1687 = vadd.f32 %v1519, %v1681
    %v1688 = vld [vmem:[#allocation4 + $0x4c] sm:$0x1]
    %v1689 = vld [vmem:[#allocation4 + $0x4d] sm:$0x1]
    %v1690 = vsel %vm176, %v1684, 0.0
    %1691 = vadd.xlane.f32.xlu0 %v1690
    %v1692 = vpop.xlane.xlu0 %1691
    %v1693 = vsel %vm176, %v1685, 0.0
    %1694 = vadd.xlane.f32.xlu0 %v1693
    %v1695 = vpop.xlane.xlu0 %1694
    %v1696 = vsel %vm176, %v1686, 0.0
    %1697 = vadd.xlane.f32.xlu0 %v1696
    %v1698 = vpop.xlane.xlu0 %1697
    %v1699 = vsel %vm176, %v1687, 0.0
    %1700 = vadd.xlane.f32.xlu0 %v1699
    %v1701 = vpop.xlane.xlu0 %1700
    %v1702 = vmul.f32 %v1692, %v701
    %v1703 = vmul.f32 %v1695, %v701
    %v1704 = vmul.f32 %v1698, %v701
    %v1705 = vmul.f32 %v1701, %v701
    %v1706 = vsub.f32 %v1684, %v1702
    %v1707 = vsub.f32 %v1685, %v1703
    %v1708 = vsub.f32 %v1686, %v1704
    %v1709 = vsub.f32 %v1687, %v1705
    %v1710 = vmul.f32 %v1706, %v1706
    %v1711 = vmul.f32 %v1707, %v1707
    %v1712 = vmul.f32 %v1708, %v1708
    %v1713 = vmul.f32 %v1709, %v1709
    %v1714 = vsel %vm176, %v1710, 0.0
    %1715 = vadd.xlane.f32.xlu0 %v1714
    %v1716 = vpop.xlane.xlu0 %1715
    %v1717 = vsel %vm176, %v1711, 0.0
    %1718 = vadd.xlane.f32.xlu0 %v1717
    %v1719 = vpop.xlane.xlu0 %1718
    %v1720 = vsel %vm176, %v1712, 0.0
    %1721 = vadd.xlane.f32.xlu0 %v1720
    %v1722 = vpop.xlane.xlu0 %1721
    %v1723 = vsel %vm176, %v1713, 0.0
    %1724 = vadd.xlane.f32.xlu0 %v1723
    %v1725 = vpop.xlane.xlu0 %1724
    %v1726 = vmul.f32 %v1716, %v701
    %v1727 = vmul.f32 %v1719, %v701
    %v1728 = vmul.f32 %v1722, %v701
    %v1729 = vmul.f32 %v1725, %v701
    %v1730 = vadd.f32 %v1726, 1e-05
    %v1731 = vadd.f32 %v1727, 1e-05
    %v1732 = vadd.f32 %v1728, 1e-05
    %v1733 = vadd.f32 %v1729, 1e-05
    %v1734 = vrsqrt.pop %v1730
    %v1735 = vrsqrt.pop %v1731
    %v1736 = vrsqrt.pop %v1732
    %v1737 = vrsqrt.pop %v1733
    %v1738 = vmul.f32 %v1706, %v1734
    %v1739 = vmul.f32 %v1707, %v1735
    %v1740 = vmul.f32 %v1708, %v1736
    %v1741 = vmul.f32 %v1709, %v1737
    %v1742 = vlaneseq
    %v1743 = vshrl.u32 %v1742, 7
    %v1744 = vsub.s32 0, %v1743
    %v1745 = vrot.slane %v1688, %v1744
    %v1746 = vmul.f32 %v1738, %v1745
    %v1747 = vmul.f32 %v1739, %v1745
    %v1748 = vmul.f32 %v1740, %v1745
    %v1749 = vmul.f32 %v1741, %v1745
    %v1750 = vlaneseq
    %v1751 = vshrl.u32 %v1750, 7
    %v1752 = vsub.s32 0, %v1751
    %v1753 = vrot.slane %v1689, %v1752
    %v1754 = vadd.f32 %v1746, %v1753
    %v1755 = vadd.f32 %v1747, %v1753
    %v1756 = vadd.f32 %v1748, %v1753
    %v1757 = vadd.f32 %v1749, %v1753
    %v1758 = vld [vmem:[#allocation2 + $0xa8] sm:$0xf]
    %v1759 = vld [vmem:[#allocation2 + $0xac] sm:$0xf]
    %v1760 = vld [vmem:[#allocation2 + $0xb0] sm:$0xf]
    %v1761 = vld [vmem:[#allocation2 + $0xb4] sm:$0xf]
    %v1762 = vld [vmem:[#allocation2 + $0xb8] sm:$0xf]
    %v1763 = vld [vmem:[#allocation2 + $0xbc] sm:$0xf]
    %v1764 = vpack.c.bf16 %v1755, %v1754
    %v1765 = vpack.c.bf16 %v1757, %v1756
    %v1766 = vld [vmem:[#allocation4 + $0x50] sm:$0x1]
    %v1767 = vlaneseq
    %v1768 = vshrl.u32 %v1767, 7
    %v1769 = vsub.s32 0, %v1768
    %v1770 = vrot.slane %v1766, %v1769
    %v1775 = vunpack.c.l.b16 %v1758
    %v1776 = vunpack.c.l.b16 %v1759
    %v1777 = vunpack.c.l.b16 %v1760
    %v1778 = vunpack.c.l.b16 %v1761
    %v1779 = vpack.c.b16 %v1776, %v1775
    %v1780 = vpack.c.b16 %v1778, %v1777
    %v1784 = vsel %vm176, %v1764, 0
    %v1787 = vsel %vm176, %v1765, 0
    %1789 = vmatprep.subr.bf16.mxu0 0
    %1790 = vmatpush1.bf16.msra.mxu0 0
    %1791 = vmatprep.subr.bf16.mxu0 0
    %1792 = vmatpush1.bf16.msra.mxu0 0
    %1793 = vmatprep.subr.bf16.mxu0 0
    %1794 = vmatpush1.bf16.msra.mxu0 0
    %1795 = vmatprep.subr.bf16.mxu0 0
    %1796 = vmatpush1.bf16.msra.mxu0 0
    %1797 = vmatprep.subr.bf16.mxu0 0
    %1798 = vmatpush1.bf16.msra.mxu0 0
    %1799 = vmatprep.subr.bf16.mxu0 0
    %1800 = vmatpush1.bf16.msra.mxu0 0
    %1801 = vmatprep.subr.bf16.mxu0 0
    %1802 = vmatpush1.bf16.msra.mxu0 %v1780
    %1803 = vmatprep.subr.bf16.mxu0 0
    %1804 = vmatpush1.bf16.msra.mxu0 %v1779
    %1805 = vmatprep.subr.bf16.mxu0 0
    %1806 = vmatpush2.bf16.msra.mxu0 0
    %1807 = vmatprep.subr.bf16.mxu0 0
    %1808 = vmatpush2.bf16.msra.mxu0 0
    %1809 = vmatprep.subr.bf16.mxu0 0
    %1810 = vmatpush2.bf16.msra.mxu0 0
    %1811 = vmatprep.subr.bf16.mxu0 0
    %1812 = vmatpush2.bf16.msra.mxu0 0
    %1813 = vmatprep.subr.bf16.mxu0 0
    %1814 = vmatpush2.bf16.msra.mxu0 0
    %1815 = vmatprep.subr.bf16.mxu0 0
    %1816 = vmatpush2.bf16.msra.mxu0 0
    %1817 = vmatprep.subr.bf16.mxu0 0
    %1818 = vmatpush2.bf16.msra.mxu0 0
    %1819 = vmatprep.subr.bf16.mxu0 0
    %1820 = vmatpush2.bf16.msra.mxu0 0
    %1821 = vmatprep.mubr.bf16.mxu0 0
    %1822 = vmatmul.mubr.bf16.gmra.mxu0 %v1784
    %v1823 = vpop.f32.mrf.mxu0
    %v1824 = vadd.f32 %v1770, %v1823
    %v1825 = vpop.f32.mrf.mxu0
    %v1826 = vpop.f32.mrf.mxu0
    %v1827 = vadd.f32 %v1770, %v1826
    %v1828 = vpop.f32.mrf.mxu0
    %1829 = vmatprep.mubr.bf16.mxu0 0
    %1830 = vmatmul.mubr.bf16.gmra.mxu0 %v1787
    %v1831 = vpop.f32.mrf.mxu0
    %v1832 = vadd.f32 %v1770, %v1831
    %v1833 = vpop.f32.mrf.mxu0
    %v1834 = vpop.f32.mrf.mxu0
    %v1835 = vadd.f32 %v1770, %v1834
    %v1836 = vpop.f32.mrf.mxu0
    %1837 = vdwg.mxu0
    %v1838 = vmax.f32 %v1824, 0.0
    %v1839 = vmax.f32 %v1827, 0.0
    %v1840 = vmax.f32 %v1832, 0.0
    %v1841 = vmax.f32 %v1835, 0.0
    %v1842 = vpack.c.bf16 %v1839, %v1838
    %v1843 = vpack.c.bf16 %v1841, %v1840
    %v1844 = vld [vmem:[#allocation4 + $0x51] sm:$0x1]
    %v1845 = vlaneseq
    %v1846 = vshrl.u32 %v1845, 7
    %v1847 = vsub.s32 0, %v1846
    %v1848 = vrot.slane %v1844, %v1847
    %v1851 = vunpack.c.l.b16 %v1762
    %v1852 = vunpack.c.l.b16 %v1763
    %v1853 = vpack.c.b16 %v1852, %v1851
    %v1856 = vsel %vm81, %v1842, 0
    %v1859 = vsel %vm81, %v1843, 0
    %1861 = vmatprep.subr.bf16.mxu0 0
    %1862 = vmatpush1.bf16.msra.mxu0 0
    %1863 = vmatprep.subr.bf16.mxu0 0
    %1864 = vmatpush1.bf16.msra.mxu0 0
    %1865 = vmatprep.subr.bf16.mxu0 0
    %1866 = vmatpush1.bf16.msra.mxu0 0
    %1867 = vmatprep.subr.bf16.mxu0 0
    %1868 = vmatpush1.bf16.msra.mxu0 0
    %1869 = vmatprep.subr.bf16.mxu0 0
    %1870 = vmatpush1.bf16.msra.mxu0 0
    %1871 = vmatprep.subr.bf16.mxu0 0
    %1872 = vmatpush1.bf16.msra.mxu0 0
    %1873 = vmatprep.subr.bf16.mxu0 0
    %1874 = vmatpush1.bf16.msra.mxu0 0
    %1875 = vmatprep.subr.bf16.mxu0 0
    %1876 = vmatpush1.bf16.msra.mxu0 %v1853
    %1877 = vmatprep.subr.bf16.mxu0 0
    %1878 = vmatpush2.bf16.msra.mxu0 0
    %1879 = vmatprep.subr.bf16.mxu0 0
    %1880 = vmatpush2.bf16.msra.mxu0 0
    %1881 = vmatprep.subr.bf16.mxu0 0
    %1882 = vmatpush2.bf16.msra.mxu0 0
    %1883 = vmatprep.subr.bf16.mxu0 0
    %1884 = vmatpush2.bf16.msra.mxu0 0
    %1885 = vmatprep.subr.bf16.mxu0 0
    %1886 = vmatpush2.bf16.msra.mxu0 0
    %1887 = vmatprep.subr.bf16.mxu0 0
    %1888 = vmatpush2.bf16.msra.mxu0 0
    %1889 = vmatprep.subr.bf16.mxu0 0
    %1890 = vmatpush2.bf16.msra.mxu0 0
    %1891 = vmatprep.subr.bf16.mxu0 0
    %1892 = vmatpush2.bf16.msra.mxu0 0
    %1893 = vmatprep.mubr.bf16.mxu0 0
    %1894 = vmatmul.mubr.bf16.gmra.mxu0 %v1856
    %v1895 = vpop.f32.mrf.mxu0
    %v1896 = vadd.f32 %v1848, %v1895
    %v1897 = vpop.f32.mrf.mxu0
    %v1898 = vpop.f32.mrf.mxu0
    %v1899 = vadd.f32 %v1848, %v1898
    %v1900 = vpop.f32.mrf.mxu0
    %1901 = vmatprep.mubr.bf16.mxu0 0
    %1902 = vmatmul.mubr.bf16.gmra.mxu0 %v1859
    %v1903 = vpop.f32.mrf.mxu0
    %v1904 = vadd.f32 %v1848, %v1903
    %v1905 = vpop.f32.mrf.mxu0
    %v1906 = vpop.f32.mrf.mxu0
    %v1907 = vadd.f32 %v1848, %v1906
    %v1908 = vpop.f32.mrf.mxu0
    %1909 = vdwg.mxu0
    %vm1910 = vcmask 7168
    %1911 = vst.msk [vmem:[%s3] sm:$0xff] %vm1910, %v1896
    %1912 = vst.msk [vmem:[%s3 + $0x8] sm:$0xff] %vm1910, %v1899
    %1913 = vst.msk [vmem:[%s3 + $0x10] sm:$0xff] %vm1910, %v1904
    %1914 = vst.msk [vmem:[%s3 + $0x18] sm:$0xff] %vm1910, %v1907
    // Predicated region
    $region22: #{tpu_custom_call.1} parent=1 // pred_check
      _
    $region23: #{tpu_custom_call.1} parent=1 // pred_check_branch
      %1916 = sbr.rel (0) target = $region25
    $region24: #{tpu_custom_call.1} parent=1 // pred_region
      _
    $region25: #{tpu_custom_call.1} parent=1 // pred_fallthru
      _
    // Predicated region
    $region26: #{tpu_custom_call.1} parent=1 // pred_check
      _
    $region27: #{tpu_custom_call.1} parent=1 // pred_check_branch
      %1918 = sbr.rel (0) target = $region29
    $region28: #{tpu_custom_call.1} parent=1 // pred_region
      _
    $region29: #{tpu_custom_call.1} parent=1 // pred_fallthru
      _
    %1919 = vsyncpa [#allocation3], 1
    %1920 = vsyncpa [#allocation5], 1

</llo_original>
